<compile_context>
chip_gen: v5e
topology: v5e:2x2
jax: 0.10.0
libtpu: 0.0.40
codegen_flags: <defaults>
</compile_context>

<pallas_src>
import functools

import jax
import jax.numpy as jnp
from jax import lax
from jax.experimental import pallas as pl
from jax.experimental.pallas import tpu as pltpu

_EPS = 1e-5


# ----------------------------------------------------------------------------
# Pallas kernel: implicit-GEMM 3x3 conv + folded-BN bias (+ fused shortcut)
# (+ ReLU).  bf16 matmuls, f32 accumulate/epilogue.
# ----------------------------------------------------------------------------
def _conv3x3_kernel(stride, Ho, Wo, relu, mode):
    def kernel(*refs):
        if mode == "proj":
            xph_ref, w_ref, b_ref, xs_ref, wsc_ref, bsc_ref, o_ref = refs
        elif mode == "identity":
            xph_ref, w_ref, b_ref, r_ref, o_ref = refs
        else:
            xph_ref, w_ref, b_ref, o_ref = refs

        Cin = xph_ref.shape[-1]
        Cout = o_ref.shape[-1]

        acc = jnp.zeros((Ho * Wo, Cout), jnp.float32)
        for ky in range(3):
            for kx in range(3):
                q = (ky % stride) * stride + (kx % stride)
                dy, dx = ky // stride, kx // stride
                xt = xph_ref[q, dy:dy + Ho, dx:dx + Wo, :].reshape(Ho * Wo, Cin)
                acc = acc + jnp.dot(xt, w_ref[ky * 3 + kx],
                                    preferred_element_type=jnp.float32)
        acc = acc + b_ref[...]                       # (1, Cout) broadcast, f32

        if mode == "proj":
            # Fused 1x1 projection shortcut (BN scale already folded into wsc).
            xs = xs_ref[0].reshape(Ho * Wo, xs_ref.shape[-1])
            acc = acc + jnp.dot(xs, wsc_ref[...],
                                preferred_element_type=jnp.float32)
            acc = acc + bsc_ref[...]
        elif mode == "identity":
            acc = acc + r_ref[0].reshape(Ho * Wo, Cout).astype(jnp.float32)

        if relu:
            acc = jnp.maximum(acc, 0.0)
        o_ref[...] = acc.reshape(1, Ho, Wo, Cout).astype(o_ref.dtype)

    return kernel


# ----------------------------------------------------------------------------
# Wrapper-side glue (plain JAX, no data inflation)
# ----------------------------------------------------------------------------
def _phase_stack(x, stride, padding, Ho, Wo):
    """Split the zero-padded NHWC input into stride-phase sub-grids so every
    conv tap becomes a *contiguous* static slice inside the kernel.
    Returns (N*stride*stride, Hph, Wph, C)."""
    N, H, W, C = x.shape
    xp = jnp.pad(x, ((0, 0), (padding, padding), (padding, padding), (0, 0)))
    dmax = 2 // stride                     # max tap offset within a phase (3x3)
    Hph, Wph = Ho + dmax, Wo + dmax
    phases = []
    for qy in range(stride):
        for qx in range(stride):
            ph = xp[:, qy::stride, qx::stride, :][:, :Hph, :Wph, :]
            pad_h, pad_w = Hph - ph.shape[1], Wph - ph.shape[2]
            if pad_h or pad_w:
                ph = jnp.pad(ph, ((0, 0), (0, pad_h), (0, pad_w), (0, 0)))
            phases.append(ph)
    stacked = jnp.stack(phases, axis=1)    # (N, s*s, Hph, Wph, C)
    return stacked.reshape(N * stride * stride, Hph, Wph, C), Hph, Wph


def conv3x3_w_to_taps(w, scale):
    # PyTorch OIHW (Cout, Cin, 3, 3) -> (9, Cin, Cout), BN scale folded, bf16.
    Cout, Cin, kh, kw = w.shape
    wt = jnp.transpose(w, (2, 3, 1, 0)).reshape(kh * kw, Cin, Cout)
    return (wt * scale.reshape(1, 1, Cout)).astype(jnp.bfloat16)


def bn_fold(gamma, beta, mean, var, eps=_EPS):
    scale = gamma / jnp.sqrt(var + eps)
    return scale, beta - mean * scale


def conv3x3_fused(x, w_taps, bias, *, stride, padding, relu, out_dtype,
                  shortcut=None):
    """3x3 conv (stride, padding) + folded-BN bias (+ fused shortcut) (+ ReLU)."""
    N, H, W, Cin = x.shape
    Cout = w_taps.shape[-1]
    Ho = (H + 2 * padding - 3) // stride + 1
    Wo = (W + 2 * padding - 3) // stride + 1
    phases, Hph, Wph = _phase_stack(x, stride, padding, Ho, Wo)
    nph = stride * stride
    bias2 = bias.reshape(1, Cout).astype(jnp.float32)

    in_specs = [
        pl.BlockSpec((nph, Hph, Wph, Cin), lambda n: (n, 0, 0, 0)),
        pl.BlockSpec((9, Cin, Cout), lambda n: (0, 0, 0)),
        pl.BlockSpec((1, Cout), lambda n: (0, 0)),
    ]
    args = [phases, w_taps, bias2]

    mode = "none"
    if shortcut is not None:
        mode = shortcut[0]
        if mode == "identity":
            r = shortcut[1]
            assert r.shape == (N, Ho, Wo, Cout), (r.shape, (N, Ho, Wo, Cout))
            in_specs.append(pl.BlockSpec((1, Ho, Wo, Cout),
                                         lambda n: (n, 0, 0, 0)))
            args.append(r.astype(jnp.float32))
        else:  # "proj"
            _, xs, wsc, bsc = shortcut
            assert xs.shape[:3] == (N, Ho, Wo), (xs.shape, (N, Ho, Wo))
            Csc = xs.shape[-1]
            in_specs += [
                pl.BlockSpec((1, Ho, Wo, Csc), lambda n: (n, 0, 0, 0)),
                pl.BlockSpec((Csc, Cout), lambda n: (0, 0)),
                pl.BlockSpec((1, Cout), lambda n: (0, 0)),
            ]
            args += [xs, wsc, bsc.reshape(1, Cout).astype(jnp.float32)]

    return pl.pallas_call(
        _conv3x3_kernel(stride, Ho, Wo, relu, mode),
        out_shape=jax.ShapeDtypeStruct((N, Ho, Wo, Cout), out_dtype),
        grid_spec=pltpu.PrefetchScalarGridSpec(
            num_scalar_prefetch=0,
            grid=(N,),
            in_specs=in_specs,
            out_specs=pl.BlockSpec((1, Ho, Wo, Cout), lambda n: (n, 0, 0, 0)),
        ),
        compiler_params=pltpu.CompilerParams(
            dimension_semantics=("parallel",),
            vmem_limit_bytes=32 * 1024 * 1024,
        ),
    )(*args)


# ----------------------------------------------------------------------------
# BasicBlock forward (eval-mode BatchNorm folded into scale/bias)
# ----------------------------------------------------------------------------
def basic_block_forward(x_nchw, params, stride=(1, 1), padding=1):
    s1, s2 = stride
    x = jnp.transpose(x_nchw, (0, 2, 3, 1)).astype(jnp.float32)   # NCHW -> NHWC
    N, H, W, Cin = x.shape
    Cout = params["conv1_w"].shape[0]
    use_proj = (s1 != 1) or (Cin != Cout)
    x_bf16 = x.astype(jnp.bfloat16)

    # conv1 -> bn1 -> relu (intermediate kept bf16: feeds conv2's bf16 matmul)
    sc1, bb1 = bn_fold(params["bn1_gamma"], params["bn1_beta"],
                       params["bn1_mean"], params["bn1_var"])
    w1 = conv3x3_w_to_taps(params["conv1_w"], sc1)
    y1 = conv3x3_fused(x_bf16, w1, bb1, stride=s1, padding=padding,
                       relu=True, out_dtype=jnp.bfloat16)

    # conv2 -> bn2 (+ fused shortcut) -> relu, all in one kernel
    sc2, bb2 = bn_fold(params["bn2_gamma"], params["bn2_beta"],
                       params["bn2_mean"], params["bn2_var"])
    w2 = conv3x3_w_to_taps(params["conv2_w"], sc2)

    if use_proj:
        ssc, bsc = bn_fold(params["sc_bn_gamma"], params["sc_bn_beta"],
                           params["sc_bn_mean"], params["sc_bn_var"])
        wsc = (jnp.transpose(params["sc_conv_w"][:, :, 0, 0], (1, 0))
               * ssc.reshape(1, Cout)).astype(jnp.bfloat16)
        xs = x_bf16[:, ::s1, ::s1, :]            # 1x1 conv, stride s1, no pad
        shortcut = ("proj", xs, wsc, bsc)
    else:
        shortcut = ("identity", x)               # identity residual in f32

    out = conv3x3_fused(y1, w2, bb2, stride=s2, padding=padding,
                        relu=True, out_dtype=jnp.float32, shortcut=shortcut)
    return jnp.transpose(out, (0, 3, 1, 2))      # NHWC -> NCHW


# ----------------------------------------------------------------------------
# Pure-JAX reference (lax.conv) for the correctness check
# ----------------------------------------------------------------------------
def reference_forward(x, params, stride, padding, eps=_EPS):
    def conv(x, w, s, p):
        return lax.conv_general_dilated(
            x, w, (s, s), [(p, p), (p, p)],
            dimension_numbers=("NCHW", "OIHW", "NCHW"))

    def bn(x, g, b, m, v):
        return ((x - m[None, :, None, None]) / jnp.sqrt(v[None, :, None, None] + eps)
                * g[None, :, None, None] + b[None, :, None, None])

    out = conv(x, params["conv1_w"], stride[0], padding)
    out = jax.nn.relu(bn(out, params["bn1_gamma"], params["bn1_beta"],
                         params["bn1_mean"], params["bn1_var"]))
    out = conv(out, params["conv2_w"], stride[1], padding)
    out = bn(out, params["bn2_gamma"], params["bn2_beta"],
             params["bn2_mean"], params["bn2_var"])
    if "sc_conv_w" in params:
        sc = conv(x, params["sc_conv_w"], stride[0], 0)
        sc = bn(sc, params["sc_bn_gamma"], params["sc_bn_beta"],
                params["sc_bn_mean"], params["sc_bn_var"])
    else:
        sc = x
    return jax.nn.relu(out + sc)


# ----------------------------------------------------------------------------
# Deterministic parameter init
# ----------------------------------------------------------------------------
def make_params(key, in_channels, out_channels, use_proj):
    ks = jax.random.split(key, 16)

    def bn_params(k0, k1, k2, k3, c):
        return (jax.random.uniform(k0, (c,), jnp.float32, 0.5, 1.5),   # gamma
                0.1 * jax.random.normal(k1, (c,), jnp.float32),        # beta
                0.1 * jax.random.normal(k2, (c,), jnp.float32),        # running_mean
                jax.random.uniform(k3, (c,), jnp.float32, 0.5, 1.5))   # running_var

    p = {}
    p["conv1_w"] = 0.1 * jax.random.normal(ks[0], (out_channels, in_channels, 3, 3), jnp.float32)
    p["bn1_gamma"], p["bn1_beta"], p["bn1_mean"], p["bn1_var"] = bn_params(ks[1], ks[2], ks[3], ks[4], out_channels)
    p["conv2_w"] = 0.1 * jax.random.normal(ks[5], (out_channels, out_channels, 3, 3), jnp.float32)
    p["bn2_gamma"], p["bn2_beta"], p["bn2_mean"], p["bn2_var"] = bn_params(ks[6], ks[7], ks[8], ks[9], out_channels)
    if use_proj:
        p["sc_conv_w"] = 0.1 * jax.random.normal(ks[10], (out_channels, in_channels, 1, 1), jnp.float32)
        p["sc_bn_gamma"], p["sc_bn_beta"], p["sc_bn_mean"], p["sc_bn_var"] = bn_params(
            ks[11], ks[12], ks[13], ks[14], out_channels)
    return p


if __name__ == "__main__":
    key = jax.random.PRNGKey(0)
    k_x, k_p, k_x2, k_p2 = jax.random.split(key, 4)

    # Case 1: downsampling block -> fused projection shortcut (stride (2, 1)).
    in_c, out_c = 4, 8
    stride, padding = (2, 1), 1
    x = jax.random.normal(k_x, (2, in_c, 16, 16), jnp.float32)
    params = make_params(k_p, in_c, out_c, use_proj=True)

    fwd = jax.jit(functools.partial(basic_block_forward, stride=stride, padding=padding))
    out = jax.block_until_ready(fwd(x, params))
    ref = jax.block_until_ready(reference_forward(x, params, stride, padding))
    assert out.shape == ref.shape, (out.shape, ref.shape)
    err = float(jnp.max(jnp.abs(out - ref)))
    assert jnp.allclose(out, ref, atol=3e-2, rtol=3e-2), err   # bf16 matmuls

    # Case 2: identity-shortcut block (stride (1, 1), same channels).
    x2 = jax.random.normal(k_x2, (2, 8, 16, 16), jnp.float32)
    params2 = make_params(k_p2, 8, 8, use_proj=False)
    fwd2 = jax.jit(functools.partial(basic_block_forward, stride=(1, 1), padding=1))
    out2 = jax.block_until_ready(fwd2(x2, params2))
    ref2 = jax.block_until_ready(reference_forward(x2, params2, (1, 1), 1))
    assert out2.shape == ref2.shape, (out2.shape, ref2.shape)
    err2 = float(jnp.max(jnp.abs(out2 - ref2)))
    assert jnp.allclose(out2, ref2, atol=3e-2, rtol=3e-2), err2

    print("KERNEL_OK")
</pallas_src>

<mosaic_0001>
module attributes {stable_mosaic.version = 11 : i64} {
  func.func @kernel(%arg0: i32, %arg1: memref<4x9x9x4xbf16, #tpu.memory_space<vmem>>, %arg2: memref<9x4x8xbf16, #tpu.memory_space<vmem>>, %arg3: memref<1x8xf32, #tpu.memory_space<vmem>>, %arg4: memref<1x8x8x8xbf16, #tpu.memory_space<vmem>>) attributes {dimension_semantics = [#tpu.dimension_semantics<parallel>], iteration_bounds = array<i64: 2>, scalar_prefetch = 0 : i64, scratch_operands = 0 : i64, tpu.core_type = #tpu.core_type<tc>, window_params = [{transform_indices = @transform_0, window_bounds = array<i64: 4, 9, 9, 4>}, {pipeline_mode = #tpu.pipeline_mode<synchronous>, transform_indices = @transform_1, window_bounds = array<i64: 9, 4, 8>}, {pipeline_mode = #tpu.pipeline_mode<synchronous>, transform_indices = @transform_2, window_bounds = array<i64: 1, 8>}, {transform_indices = @transform_3, window_bounds = array<i64: 1, 8, 8, 8>}]} {
    %cst = arith.constant 0.000000e+00 : f32
    %0 = vector.broadcast %cst : f32 to vector<64x8xf32>
    %c0 = arith.constant 0 : index
    %c0_0 = arith.constant 0 : index
    %c0_1 = arith.constant 0 : index
    %c0_2 = arith.constant 0 : index
    %1 = vector.load %arg1[%c0, %c0_0, %c0_1, %c0_2] : memref<4x9x9x4xbf16, #tpu.memory_space<vmem>>, vector<1x8x8x4xbf16>
    %2 = vector.shape_cast %1 : vector<1x8x8x4xbf16> to vector<8x8x4xbf16>
    %3 = vector.shape_cast %2 : vector<8x8x4xbf16> to vector<64x4xbf16>
    %c0_3 = arith.constant 0 : index
    %c0_4 = arith.constant 0 : index
    %c0_5 = arith.constant 0 : index
    %4 = vector.load %arg2[%c0_3, %c0_4, %c0_5] : memref<9x4x8xbf16, #tpu.memory_space<vmem>>, vector<1x4x8xbf16>
    %5 = vector.shape_cast %4 : vector<1x4x8xbf16> to vector<4x8xbf16>
    %cst_6 = arith.constant dense<0.000000e+00> : vector<64x8xf32>
    %6 = tpu.matmul %3, %5, %cst_6 {dimension_numbers = #tpu.dot_dimension_numbers<[1], [0], [0], [1], [0, 0, 1, 1], [], []>} : vector<64x4xbf16>, vector<4x8xbf16>, vector<64x8xf32> -> vector<64x8xf32>
    %7 = arith.addf %0, %6 : vector<64x8xf32>
    %c1 = arith.constant 1 : index
    %c0_7 = arith.constant 0 : index
    %c0_8 = arith.constant 0 : index
    %c0_9 = arith.constant 0 : index
    %8 = vector.load %arg1[%c1, %c0_7, %c0_8, %c0_9] : memref<4x9x9x4xbf16, #tpu.memory_space<vmem>>, vector<1x8x8x4xbf16>
    %9 = vector.shape_cast %8 : vector<1x8x8x4xbf16> to vector<8x8x4xbf16>
    %10 = vector.shape_cast %9 : vector<8x8x4xbf16> to vector<64x4xbf16>
    %c1_10 = arith.constant 1 : index
    %c0_11 = arith.constant 0 : index
    %c0_12 = arith.constant 0 : index
    %11 = vector.load %arg2[%c1_10, %c0_11, %c0_12] : memref<9x4x8xbf16, #tpu.memory_space<vmem>>, vector<1x4x8xbf16>
    %12 = vector.shape_cast %11 : vector<1x4x8xbf16> to vector<4x8xbf16>
    %cst_13 = arith.constant dense<0.000000e+00> : vector<64x8xf32>
    %13 = tpu.matmul %10, %12, %cst_13 {dimension_numbers = #tpu.dot_dimension_numbers<[1], [0], [0], [1], [0, 0, 1, 1], [], []>} : vector<64x4xbf16>, vector<4x8xbf16>, vector<64x8xf32> -> vector<64x8xf32>
    %14 = arith.addf %7, %13 : vector<64x8xf32>
    %c0_14 = arith.constant 0 : index
    %c0_15 = arith.constant 0 : index
    %c1_16 = arith.constant 1 : index
    %c0_17 = arith.constant 0 : index
    %15 = vector.load %arg1[%c0_14, %c0_15, %c1_16, %c0_17] : memref<4x9x9x4xbf16, #tpu.memory_space<vmem>>, vector<1x8x8x4xbf16>
    %16 = vector.shape_cast %15 : vector<1x8x8x4xbf16> to vector<8x8x4xbf16>
    %17 = vector.shape_cast %16 : vector<8x8x4xbf16> to vector<64x4xbf16>
    %c2 = arith.constant 2 : index
    %c0_18 = arith.constant 0 : index
    %c0_19 = arith.constant 0 : index
    %18 = vector.load %arg2[%c2, %c0_18, %c0_19] : memref<9x4x8xbf16, #tpu.memory_space<vmem>>, vector<1x4x8xbf16>
    %19 = vector.shape_cast %18 : vector<1x4x8xbf16> to vector<4x8xbf16>
    %cst_20 = arith.constant dense<0.000000e+00> : vector<64x8xf32>
    %20 = tpu.matmul %17, %19, %cst_20 {dimension_numbers = #tpu.dot_dimension_numbers<[1], [0], [0], [1], [0, 0, 1, 1], [], []>} : vector<64x4xbf16>, vector<4x8xbf16>, vector<64x8xf32> -> vector<64x8xf32>
    %21 = arith.addf %14, %20 : vector<64x8xf32>
    %c2_21 = arith.constant 2 : index
    %c0_22 = arith.constant 0 : index
    %c0_23 = arith.constant 0 : index
    %c0_24 = arith.constant 0 : index
    %22 = vector.load %arg1[%c2_21, %c0_22, %c0_23, %c0_24] : memref<4x9x9x4xbf16, #tpu.memory_space<vmem>>, vector<1x8x8x4xbf16>
    %23 = vector.shape_cast %22 : vector<1x8x8x4xbf16> to vector<8x8x4xbf16>
    %24 = vector.shape_cast %23 : vector<8x8x4xbf16> to vector<64x4xbf16>
    %c3 = arith.constant 3 : index
    %c0_25 = arith.constant 0 : index
    %c0_26 = arith.constant 0 : index
    %25 = vector.load %arg2[%c3, %c0_25, %c0_26] : memref<9x4x8xbf16, #tpu.memory_space<vmem>>, vector<1x4x8xbf16>
    %26 = vector.shape_cast %25 : vector<1x4x8xbf16> to vector<4x8xbf16>
    %cst_27 = arith.constant dense<0.000000e+00> : vector<64x8xf32>
    %27 = tpu.matmul %24, %26, %cst_27 {dimension_numbers = #tpu.dot_dimension_numbers<[1], [0], [0], [1], [0, 0, 1, 1], [], []>} : vector<64x4xbf16>, vector<4x8xbf16>, vector<64x8xf32> -> vector<64x8xf32>
    %28 = arith.addf %21, %27 : vector<64x8xf32>
    %c3_28 = arith.constant 3 : index
    %c0_29 = arith.constant 0 : index
    %c0_30 = arith.constant 0 : index
    %c0_31 = arith.constant 0 : index
    %29 = vector.load %arg1[%c3_28, %c0_29, %c0_30, %c0_31] : memref<4x9x9x4xbf16, #tpu.memory_space<vmem>>, vector<1x8x8x4xbf16>
    %30 = vector.shape_cast %29 : vector<1x8x8x4xbf16> to vector<8x8x4xbf16>
    %31 = vector.shape_cast %30 : vector<8x8x4xbf16> to vector<64x4xbf16>
    %c4 = arith.constant 4 : index
    %c0_32 = arith.constant 0 : index
    %c0_33 = arith.constant 0 : index
    %32 = vector.load %arg2[%c4, %c0_32, %c0_33] : memref<9x4x8xbf16, #tpu.memory_space<vmem>>, vector<1x4x8xbf16>
    %33 = vector.shape_cast %32 : vector<1x4x8xbf16> to vector<4x8xbf16>
    %cst_34 = arith.constant dense<0.000000e+00> : vector<64x8xf32>
    %34 = tpu.matmul %31, %33, %cst_34 {dimension_numbers = #tpu.dot_dimension_numbers<[1], [0], [0], [1], [0, 0, 1, 1], [], []>} : vector<64x4xbf16>, vector<4x8xbf16>, vector<64x8xf32> -> vector<64x8xf32>
    %35 = arith.addf %28, %34 : vector<64x8xf32>
    %c2_35 = arith.constant 2 : index
    %c0_36 = arith.constant 0 : index
    %c1_37 = arith.constant 1 : index
    %c0_38 = arith.constant 0 : index
    %36 = vector.load %arg1[%c2_35, %c0_36, %c1_37, %c0_38] : memref<4x9x9x4xbf16, #tpu.memory_space<vmem>>, vector<1x8x8x4xbf16>
    %37 = vector.shape_cast %36 : vector<1x8x8x4xbf16> to vector<8x8x4xbf16>
    %38 = vector.shape_cast %37 : vector<8x8x4xbf16> to vector<64x4xbf16>
    %c5 = arith.constant 5 : index
    %c0_39 = arith.constant 0 : index
    %c0_40 = arith.constant 0 : index
    %39 = vector.load %arg2[%c5, %c0_39, %c0_40] : memref<9x4x8xbf16, #tpu.memory_space<vmem>>, vector<1x4x8xbf16>
    %40 = vector.shape_cast %39 : vector<1x4x8xbf16> to vector<4x8xbf16>
    %cst_41 = arith.constant dense<0.000000e+00> : vector<64x8xf32>
    %41 = tpu.matmul %38, %40, %cst_41 {dimension_numbers = #tpu.dot_dimension_numbers<[1], [0], [0], [1], [0, 0, 1, 1], [], []>} : vector<64x4xbf16>, vector<4x8xbf16>, vector<64x8xf32> -> vector<64x8xf32>
    %42 = arith.addf %35, %41 : vector<64x8xf32>
    %c0_42 = arith.constant 0 : index
    %c1_43 = arith.constant 1 : index
    %c0_44 = arith.constant 0 : index
    %c0_45 = arith.constant 0 : index
    %43 = vector.load %arg1[%c0_42, %c1_43, %c0_44, %c0_45] : memref<4x9x9x4xbf16, #tpu.memory_space<vmem>>, vector<1x8x8x4xbf16>
    %44 = vector.shape_cast %43 : vector<1x8x8x4xbf16> to vector<8x8x4xbf16>
    %45 = vector.shape_cast %44 : vector<8x8x4xbf16> to vector<64x4xbf16>
    %c6 = arith.constant 6 : index
    %c0_46 = arith.constant 0 : index
    %c0_47 = arith.constant 0 : index
    %46 = vector.load %arg2[%c6, %c0_46, %c0_47] : memref<9x4x8xbf16, #tpu.memory_space<vmem>>, vector<1x4x8xbf16>
    %47 = vector.shape_cast %46 : vector<1x4x8xbf16> to vector<4x8xbf16>
    %cst_48 = arith.constant dense<0.000000e+00> : vector<64x8xf32>
    %48 = tpu.matmul %45, %47, %cst_48 {dimension_numbers = #tpu.dot_dimension_numbers<[1], [0], [0], [1], [0, 0, 1, 1], [], []>} : vector<64x4xbf16>, vector<4x8xbf16>, vector<64x8xf32> -> vector<64x8xf32>
    %49 = arith.addf %42, %48 : vector<64x8xf32>
    %c1_49 = arith.constant 1 : index
    %c1_50 = arith.constant 1 : index
    %c0_51 = arith.constant 0 : index
    %c0_52 = arith.constant 0 : index
    %50 = vector.load %arg1[%c1_49, %c1_50, %c0_51, %c0_52] : memref<4x9x9x4xbf16, #tpu.memory_space<vmem>>, vector<1x8x8x4xbf16>
    %51 = vector.shape_cast %50 : vector<1x8x8x4xbf16> to vector<8x8x4xbf16>
    %52 = vector.shape_cast %51 : vector<8x8x4xbf16> to vector<64x4xbf16>
    %c7 = arith.constant 7 : index
    %c0_53 = arith.constant 0 : index
    %c0_54 = arith.constant 0 : index
    %53 = vector.load %arg2[%c7, %c0_53, %c0_54] : memref<9x4x8xbf16, #tpu.memory_space<vmem>>, vector<1x4x8xbf16>
    %54 = vector.shape_cast %53 : vector<1x4x8xbf16> to vector<4x8xbf16>
    %cst_55 = arith.constant dense<0.000000e+00> : vector<64x8xf32>
    %55 = tpu.matmul %52, %54, %cst_55 {dimension_numbers = #tpu.dot_dimension_numbers<[1], [0], [0], [1], [0, 0, 1, 1], [], []>} : vector<64x4xbf16>, vector<4x8xbf16>, vector<64x8xf32> -> vector<64x8xf32>
    %56 = arith.addf %49, %55 : vector<64x8xf32>
    %c0_56 = arith.constant 0 : index
    %c1_57 = arith.constant 1 : index
    %c1_58 = arith.constant 1 : index
    %c0_59 = arith.constant 0 : index
    %57 = vector.load %arg1[%c0_56, %c1_57, %c1_58, %c0_59] : memref<4x9x9x4xbf16, #tpu.memory_space<vmem>>, vector<1x8x8x4xbf16>
    %58 = vector.shape_cast %57 : vector<1x8x8x4xbf16> to vector<8x8x4xbf16>
    %59 = vector.shape_cast %58 : vector<8x8x4xbf16> to vector<64x4xbf16>
    %c8 = arith.constant 8 : index
    %c0_60 = arith.constant 0 : index
    %c0_61 = arith.constant 0 : index
    %60 = vector.load %arg2[%c8, %c0_60, %c0_61] : memref<9x4x8xbf16, #tpu.memory_space<vmem>>, vector<1x4x8xbf16>
    %61 = vector.shape_cast %60 : vector<1x4x8xbf16> to vector<4x8xbf16>
    %cst_62 = arith.constant dense<0.000000e+00> : vector<64x8xf32>
    %62 = tpu.matmul %59, %61, %cst_62 {dimension_numbers = #tpu.dot_dimension_numbers<[1], [0], [0], [1], [0, 0, 1, 1], [], []>} : vector<64x4xbf16>, vector<4x8xbf16>, vector<64x8xf32> -> vector<64x8xf32>
    %63 = arith.addf %56, %62 : vector<64x8xf32>
    %c0_63 = arith.constant 0 : index
    %c0_64 = arith.constant 0 : index
    %64 = vector.load %arg3[%c0_63, %c0_64] : memref<1x8xf32, #tpu.memory_space<vmem>>, vector<1x8xf32>
    %65 = vector.broadcast %64 : vector<1x8xf32> to vector<64x8xf32>
    %66 = arith.addf %63, %65 : vector<64x8xf32>
    %cst_65 = arith.constant 0.000000e+00 : f32
    %67 = vector.broadcast %cst_65 : f32 to vector<64x8xf32>
    %68 = arith.maximumf %66, %67 : vector<64x8xf32>
    %69 = vector.shape_cast %68 : vector<64x8xf32> to vector<1x8x8x8xf32>
    %70 = arith.truncf %69 : vector<1x8x8x8xf32> to vector<1x8x8x8xbf16>
    %c0_66 = arith.constant 0 : index
    %c0_67 = arith.constant 0 : index
    %c0_68 = arith.constant 0 : index
    %c0_69 = arith.constant 0 : index
    %71 = vector.load %arg4[%c0_66, %c0_67, %c0_68, %c0_69] : memref<1x8x8x8xbf16, #tpu.memory_space<vmem>>, vector<1x8x8x8xbf16>
    tpu.vector_store %arg4[%c0_66, %c0_67, %c0_68, %c0_69], %70 {strides = array<i32>} : memref<1x8x8x8xbf16, #tpu.memory_space<vmem>>, vector<1x8x8x8xbf16>,
    return
  }
  func.func @transform_0(%arg0: i32) -> (i32, i32, i32, i32) {
    %c0_i32 = arith.constant 0 : i32
    %c0_i32_0 = arith.constant 0 : i32
    %c0_i32_1 = arith.constant 0 : i32
    %c0_i32_2 = arith.constant 0 : i32
    return %arg0, %c0_i32, %c0_i32_0, %c0_i32_1 : i32, i32, i32, i32
  }
  func.func @transform_1(%arg0: i32) -> (i32, i32, i32) {
    %c0_i32 = arith.constant 0 : i32
    %c0_i32_0 = arith.constant 0 : i32
    %c0_i32_1 = arith.constant 0 : i32
    %c0_i32_2 = arith.constant 0 : i32
    return %c0_i32, %c0_i32_0, %c0_i32_1 : i32, i32, i32
  }
  func.func @transform_2(%arg0: i32) -> (i32, i32) {
    %c0_i32 = arith.constant 0 : i32
    %c0_i32_0 = arith.constant 0 : i32
    %c0_i32_1 = arith.constant 0 : i32
    return %c0_i32, %c0_i32_0 : i32, i32
  }
  func.func @transform_3(%arg0: i32) -> (i32, i32, i32, i32) {
    %c0_i32 = arith.constant 0 : i32
    %c0_i32_0 = arith.constant 0 : i32
    %c0_i32_1 = arith.constant 0 : i32
    %c0_i32_2 = arith.constant 0 : i32
    return %arg0, %c0_i32, %c0_i32_0, %c0_i32_1 : i32, i32, i32, i32
  }
}

module attributes {stable_mosaic.version = 11 : i64} {
  func.func @kernel(%arg0: i32, %arg1: memref<1x10x10x8xbf16, #tpu.memory_space<vmem>>, %arg2: memref<9x8x8xbf16, #tpu.memory_space<vmem>>, %arg3: memref<1x8xf32, #tpu.memory_space<vmem>>, %arg4: memref<1x8x8x4xbf16, #tpu.memory_space<vmem>>, %arg5: memref<4x8xbf16, #tpu.memory_space<vmem>>, %arg6: memref<1x8xf32, #tpu.memory_space<vmem>>, %arg7: memref<1x8x8x8xf32, #tpu.memory_space<vmem>>) attributes {dimension_semantics = [#tpu.dimension_semantics<parallel>], iteration_bounds = array<i64: 2>, scalar_prefetch = 0 : i64, scratch_operands = 0 : i64, tpu.core_type = #tpu.core_type<tc>, window_params = [{transform_indices = @transform_0, window_bounds = array<i64: 1, 10, 10, 8>}, {pipeline_mode = #tpu.pipeline_mode<synchronous>, transform_indices = @transform_1, window_bounds = array<i64: 9, 8, 8>}, {pipeline_mode = #tpu.pipeline_mode<synchronous>, transform_indices = @transform_2, window_bounds = array<i64: 1, 8>}, {transform_indices = @transform_3, window_bounds = array<i64: 1, 8, 8, 4>}, {pipeline_mode = #tpu.pipeline_mode<synchronous>, transform_indices = @transform_4, window_bounds = array<i64: 4, 8>}, {pipeline_mode = #tpu.pipeline_mode<synchronous>, transform_indices = @transform_5, window_bounds = array<i64: 1, 8>}, {transform_indices = @transform_6, window_bounds = array<i64: 1, 8, 8, 8>}]} {
    %cst = arith.constant 0.000000e+00 : f32
    %0 = vector.broadcast %cst : f32 to vector<64x8xf32>
    %c0 = arith.constant 0 : index
    %c0_0 = arith.constant 0 : index
    %c0_1 = arith.constant 0 : index
    %c0_2 = arith.constant 0 : index
    %1 = vector.load %arg1[%c0, %c0_0, %c0_1, %c0_2] : memref<1x10x10x8xbf16, #tpu.memory_space<vmem>>, vector<1x8x8x8xbf16>
    %2 = vector.shape_cast %1 : vector<1x8x8x8xbf16> to vector<8x8x8xbf16>
    %3 = vector.shape_cast %2 : vector<8x8x8xbf16> to vector<64x8xbf16>
    %c0_3 = arith.constant 0 : index
    %c0_4 = arith.constant 0 : index
    %c0_5 = arith.constant 0 : index
    %4 = vector.load %arg2[%c0_3, %c0_4, %c0_5] : memref<9x8x8xbf16, #tpu.memory_space<vmem>>, vector<1x8x8xbf16>
    %5 = vector.shape_cast %4 : vector<1x8x8xbf16> to vector<8x8xbf16>
    %cst_6 = arith.constant dense<0.000000e+00> : vector<64x8xf32>
    %6 = tpu.matmul %3, %5, %cst_6 {dimension_numbers = #tpu.dot_dimension_numbers<[1], [0], [0], [1], [0, 0, 1, 1], [], []>} : vector<64x8xbf16>, vector<8x8xbf16>, vector<64x8xf32> -> vector<64x8xf32>
    %7 = arith.addf %0, %6 : vector<64x8xf32>
    %c0_7 = arith.constant 0 : index
    %c0_8 = arith.constant 0 : index
    %c1 = arith.constant 1 : index
    %c0_9 = arith.constant 0 : index
    %8 = vector.load %arg1[%c0_7, %c0_8, %c1, %c0_9] : memref<1x10x10x8xbf16, #tpu.memory_space<vmem>>, vector<1x8x8x8xbf16>
    %9 = vector.shape_cast %8 : vector<1x8x8x8xbf16> to vector<8x8x8xbf16>
    %10 = vector.shape_cast %9 : vector<8x8x8xbf16> to vector<64x8xbf16>
    %c1_10 = arith.constant 1 : index
    %c0_11 = arith.constant 0 : index
    %c0_12 = arith.constant 0 : index
    %11 = vector.load %arg2[%c1_10, %c0_11, %c0_12] : memref<9x8x8xbf16, #tpu.memory_space<vmem>>, vector<1x8x8xbf16>
    %12 = vector.shape_cast %11 : vector<1x8x8xbf16> to vector<8x8xbf16>
    %cst_13 = arith.constant dense<0.000000e+00> : vector<64x8xf32>
    %13 = tpu.matmul %10, %12, %cst_13 {dimension_numbers = #tpu.dot_dimension_numbers<[1], [0], [0], [1], [0, 0, 1, 1], [], []>} : vector<64x8xbf16>, vector<8x8xbf16>, vector<64x8xf32> -> vector<64x8xf32>
    %14 = arith.addf %7, %13 : vector<64x8xf32>
    %c0_14 = arith.constant 0 : index
    %c0_15 = arith.constant 0 : index
    %c2 = arith.constant 2 : index
    %c0_16 = arith.constant 0 : index
    %15 = vector.load %arg1[%c0_14, %c0_15, %c2, %c0_16] : memref<1x10x10x8xbf16, #tpu.memory_space<vmem>>, vector<1x8x8x8xbf16>
    %16 = vector.shape_cast %15 : vector<1x8x8x8xbf16> to vector<8x8x8xbf16>
    %17 = vector.shape_cast %16 : vector<8x8x8xbf16> to vector<64x8xbf16>
    %c2_17 = arith.constant 2 : index
    %c0_18 = arith.constant 0 : index
    %c0_19 = arith.constant 0 : index
    %18 = vector.load %arg2[%c2_17, %c0_18, %c0_19] : memref<9x8x8xbf16, #tpu.memory_space<vmem>>, vector<1x8x8xbf16>
    %19 = vector.shape_cast %18 : vector<1x8x8xbf16> to vector<8x8xbf16>
    %cst_20 = arith.constant dense<0.000000e+00> : vector<64x8xf32>
    %20 = tpu.matmul %17, %19, %cst_20 {dimension_numbers = #tpu.dot_dimension_numbers<[1], [0], [0], [1], [0, 0, 1, 1], [], []>} : vector<64x8xbf16>, vector<8x8xbf16>, vector<64x8xf32> -> vector<64x8xf32>
    %21 = arith.addf %14, %20 : vector<64x8xf32>
    %c0_21 = arith.constant 0 : index
    %c1_22 = arith.constant 1 : index
    %c0_23 = arith.constant 0 : index
    %c0_24 = arith.constant 0 : index
    %22 = vector.load %arg1[%c0_21, %c1_22, %c0_23, %c0_24] : memref<1x10x10x8xbf16, #tpu.memory_space<vmem>>, vector<1x8x8x8xbf16>
    %23 = vector.shape_cast %22 : vector<1x8x8x8xbf16> to vector<8x8x8xbf16>
    %24 = vector.shape_cast %23 : vector<8x8x8xbf16> to vector<64x8xbf16>
    %c3 = arith.constant 3 : index
    %c0_25 = arith.constant 0 : index
    %c0_26 = arith.constant 0 : index
    %25 = vector.load %arg2[%c3, %c0_25, %c0_26] : memref<9x8x8xbf16, #tpu.memory_space<vmem>>, vector<1x8x8xbf16>
    %26 = vector.shape_cast %25 : vector<1x8x8xbf16> to vector<8x8xbf16>
    %cst_27 = arith.constant dense<0.000000e+00> : vector<64x8xf32>
    %27 = tpu.matmul %24, %26, %cst_27 {dimension_numbers = #tpu.dot_dimension_numbers<[1], [0], [0], [1], [0, 0, 1, 1], [], []>} : vector<64x8xbf16>, vector<8x8xbf16>, vector<64x8xf32> -> vector<64x8xf32>
    %28 = arith.addf %21, %27 : vector<64x8xf32>
    %c0_28 = arith.constant 0 : index
    %c1_29 = arith.constant 1 : index
    %c1_30 = arith.constant 1 : index
    %c0_31 = arith.constant 0 : index
    %29 = vector.load %arg1[%c0_28, %c1_29, %c1_30, %c0_31] : memref<1x10x10x8xbf16, #tpu.memory_space<vmem>>, vector<1x8x8x8xbf16>
    %30 = vector.shape_cast %29 : vector<1x8x8x8xbf16> to vector<8x8x8xbf16>
    %31 = vector.shape_cast %30 : vector<8x8x8xbf16> to vector<64x8xbf16>
    %c4 = arith.constant 4 : index
    %c0_32 = arith.constant 0 : index
    %c0_33 = arith.constant 0 : index
    %32 = vector.load %arg2[%c4, %c0_32, %c0_33] : memref<9x8x8xbf16, #tpu.memory_space<vmem>>, vector<1x8x8xbf16>
    %33 = vector.shape_cast %32 : vector<1x8x8xbf16> to vector<8x8xbf16>
    %cst_34 = arith.constant dense<0.000000e+00> : vector<64x8xf32>
    %34 = tpu.matmul %31, %33, %cst_34 {dimension_numbers = #tpu.dot_dimension_numbers<[1], [0], [0], [1], [0, 0, 1, 1], [], []>} : vector<64x8xbf16>, vector<8x8xbf16>, vector<64x8xf32> -> vector<64x8xf32>
    %35 = arith.addf %28, %34 : vector<64x8xf32>
    %c0_35 = arith.constant 0 : index
    %c1_36 = arith.constant 1 : index
    %c2_37 = arith.constant 2 : index
    %c0_38 = arith.constant 0 : index
    %36 = vector.load %arg1[%c0_35, %c1_36, %c2_37, %c0_38] : memref<1x10x10x8xbf16, #tpu.memory_space<vmem>>, vector<1x8x8x8xbf16>
    %37 = vector.shape_cast %36 : vector<1x8x8x8xbf16> to vector<8x8x8xbf16>
    %38 = vector.shape_cast %37 : vector<8x8x8xbf16> to vector<64x8xbf16>
    %c5 = arith.constant 5 : index
    %c0_39 = arith.constant 0 : index
    %c0_40 = arith.constant 0 : index
    %39 = vector.load %arg2[%c5, %c0_39, %c0_40] : memref<9x8x8xbf16, #tpu.memory_space<vmem>>, vector<1x8x8xbf16>
    %40 = vector.shape_cast %39 : vector<1x8x8xbf16> to vector<8x8xbf16>
    %cst_41 = arith.constant dense<0.000000e+00> : vector<64x8xf32>
    %41 = tpu.matmul %38, %40, %cst_41 {dimension_numbers = #tpu.dot_dimension_numbers<[1], [0], [0], [1], [0, 0, 1, 1], [], []>} : vector<64x8xbf16>, vector<8x8xbf16>, vector<64x8xf32> -> vector<64x8xf32>
    %42 = arith.addf %35, %41 : vector<64x8xf32>
    %c0_42 = arith.constant 0 : index
    %c2_43 = arith.constant 2 : index
    %c0_44 = arith.constant 0 : index
    %c0_45 = arith.constant 0 : index
    %43 = vector.load %arg1[%c0_42, %c2_43, %c0_44, %c0_45] : memref<1x10x10x8xbf16, #tpu.memory_space<vmem>>, vector<1x8x8x8xbf16>
    %44 = vector.shape_cast %43 : vector<1x8x8x8xbf16> to vector<8x8x8xbf16>
    %45 = vector.shape_cast %44 : vector<8x8x8xbf16> to vector<64x8xbf16>
    %c6 = arith.constant 6 : index
    %c0_46 = arith.constant 0 : index
    %c0_47 = arith.constant 0 : index
    %46 = vector.load %arg2[%c6, %c0_46, %c0_47] : memref<9x8x8xbf16, #tpu.memory_space<vmem>>, vector<1x8x8xbf16>
    %47 = vector.shape_cast %46 : vector<1x8x8xbf16> to vector<8x8xbf16>
    %cst_48 = arith.constant dense<0.000000e+00> : vector<64x8xf32>
    %48 = tpu.matmul %45, %47, %cst_48 {dimension_numbers = #tpu.dot_dimension_numbers<[1], [0], [0], [1], [0, 0, 1, 1], [], []>} : vector<64x8xbf16>, vector<8x8xbf16>, vector<64x8xf32> -> vector<64x8xf32>
    %49 = arith.addf %42, %48 : vector<64x8xf32>
    %c0_49 = arith.constant 0 : index
    %c2_50 = arith.constant 2 : index
    %c1_51 = arith.constant 1 : index
    %c0_52 = arith.constant 0 : index
    %50 = vector.load %arg1[%c0_49, %c2_50, %c1_51, %c0_52] : memref<1x10x10x8xbf16, #tpu.memory_space<vmem>>, vector<1x8x8x8xbf16>
    %51 = vector.shape_cast %50 : vector<1x8x8x8xbf16> to vector<8x8x8xbf16>
    %52 = vector.shape_cast %51 : vector<8x8x8xbf16> to vector<64x8xbf16>
    %c7 = arith.constant 7 : index
    %c0_53 = arith.constant 0 : index
    %c0_54 = arith.constant 0 : index
    %53 = vector.load %arg2[%c7, %c0_53, %c0_54] : memref<9x8x8xbf16, #tpu.memory_space<vmem>>, vector<1x8x8xbf16>
    %54 = vector.shape_cast %53 : vector<1x8x8xbf16> to vector<8x8xbf16>
    %cst_55 = arith.constant dense<0.000000e+00> : vector<64x8xf32>
    %55 = tpu.matmul %52, %54, %cst_55 {dimension_numbers = #tpu.dot_dimension_numbers<[1], [0], [0], [1], [0, 0, 1, 1], [], []>} : vector<64x8xbf16>, vector<8x8xbf16>, vector<64x8xf32> -> vector<64x8xf32>
    %56 = arith.addf %49, %55 : vector<64x8xf32>
    %c0_56 = arith.constant 0 : index
    %c2_57 = arith.constant 2 : index
    %c2_58 = arith.constant 2 : index
    %c0_59 = arith.constant 0 : index
    %57 = vector.load %arg1[%c0_56, %c2_57, %c2_58, %c0_59] : memref<1x10x10x8xbf16, #tpu.memory_space<vmem>>, vector<1x8x8x8xbf16>
    %58 = vector.shape_cast %57 : vector<1x8x8x8xbf16> to vector<8x8x8xbf16>
    %59 = vector.shape_cast %58 : vector<8x8x8xbf16> to vector<64x8xbf16>
    %c8 = arith.constant 8 : index
    %c0_60 = arith.constant 0 : index
    %c0_61 = arith.constant 0 : index
    %60 = vector.load %arg2[%c8, %c0_60, %c0_61] : memref<9x8x8xbf16, #tpu.memory_space<vmem>>, vector<1x8x8xbf16>
    %61 = vector.shape_cast %60 : vector<1x8x8xbf16> to vector<8x8xbf16>
    %cst_62 = arith.constant dense<0.000000e+00> : vector<64x8xf32>
    %62 = tpu.matmul %59, %61, %cst_62 {dimension_numbers = #tpu.dot_dimension_numbers<[1], [0], [0], [1], [0, 0, 1, 1], [], []>} : vector<64x8xbf16>, vector<8x8xbf16>, vector<64x8xf32> -> vector<64x8xf32>
    %63 = arith.addf %56, %62 : vector<64x8xf32>
    %c0_63 = arith.constant 0 : index
    %c0_64 = arith.constant 0 : index
    %64 = vector.load %arg3[%c0_63, %c0_64] : memref<1x8xf32, #tpu.memory_space<vmem>>, vector<1x8xf32>
    %65 = vector.broadcast %64 : vector<1x8xf32> to vector<64x8xf32>
    %66 = arith.addf %63, %65 : vector<64x8xf32>
    %c0_65 = arith.constant 0 : index
    %c0_66 = arith.constant 0 : index
    %c0_67 = arith.constant 0 : index
    %c0_68 = arith.constant 0 : index
    %67 = vector.load %arg4[%c0_65, %c0_66, %c0_67, %c0_68] : memref<1x8x8x4xbf16, #tpu.memory_space<vmem>>, vector<1x8x8x4xbf16>
    %68 = vector.shape_cast %67 : vector<1x8x8x4xbf16> to vector<8x8x4xbf16>
    %69 = vector.shape_cast %68 : vector<8x8x4xbf16> to vector<64x4xbf16>
    %c0_69 = arith.constant 0 : index
    %c0_70 = arith.constant 0 : index
    %70 = vector.load %arg5[%c0_69, %c0_70] : memref<4x8xbf16, #tpu.memory_space<vmem>>, vector<4x8xbf16>
    %cst_71 = arith.constant dense<0.000000e+00> : vector<64x8xf32>
    %71 = tpu.matmul %69, %70, %cst_71 {dimension_numbers = #tpu.dot_dimension_numbers<[1], [0], [0], [1], [0, 0, 1, 1], [], []>} : vector<64x4xbf16>, vector<4x8xbf16>, vector<64x8xf32> -> vector<64x8xf32>
    %72 = arith.addf %66, %71 : vector<64x8xf32>
    %c0_72 = arith.constant 0 : index
    %c0_73 = arith.constant 0 : index
    %73 = vector.load %arg6[%c0_72, %c0_73] : memref<1x8xf32, #tpu.memory_space<vmem>>, vector<1x8xf32>
    %74 = vector.broadcast %73 : vector<1x8xf32> to vector<64x8xf32>
    %75 = arith.addf %72, %74 : vector<64x8xf32>
    %cst_74 = arith.constant 0.000000e+00 : f32
    %76 = vector.broadcast %cst_74 : f32 to vector<64x8xf32>
    %77 = arith.maximumf %75, %76 : vector<64x8xf32>
    %78 = vector.shape_cast %77 : vector<64x8xf32> to vector<1x8x8x8xf32>
    %c0_75 = arith.constant 0 : index
    %c0_76 = arith.constant 0 : index
    %c0_77 = arith.constant 0 : index
    %c0_78 = arith.constant 0 : index
    %79 = vector.load %arg7[%c0_75, %c0_76, %c0_77, %c0_78] : memref<1x8x8x8xf32, #tpu.memory_space<vmem>>, vector<1x8x8x8xf32>
    tpu.vector_store %arg7[%c0_75, %c0_76, %c0_77, %c0_78], %78 {strides = array<i32>} : memref<1x8x8x8xf32, #tpu.memory_space<vmem>>, vector<1x8x8x8xf32>,
    return
  }
  func.func @transform_0(%arg0: i32) -> (i32, i32, i32, i32) {
    %c0_i32 = arith.constant 0 : i32
    %c0_i32_0 = arith.constant 0 : i32
    %c0_i32_1 = arith.constant 0 : i32
    %c0_i32_2 = arith.constant 0 : i32
    return %arg0, %c0_i32, %c0_i32_0, %c0_i32_1 : i32, i32, i32, i32
  }
  func.func @transform_1(%arg0: i32) -> (i32, i32, i32) {
    %c0_i32 = arith.constant 0 : i32
    %c0_i32_0 = arith.constant 0 : i32
    %c0_i32_1 = arith.constant 0 : i32
    %c0_i32_2 = arith.constant 0 : i32
    return %c0_i32, %c0_i32_0, %c0_i32_1 : i32, i32, i32
  }
  func.func @transform_2(%arg0: i32) -> (i32, i32) {
    %c0_i32 = arith.constant 0 : i32
    %c0_i32_0 = arith.constant 0 : i32
    %c0_i32_1 = arith.constant 0 : i32
    return %c0_i32, %c0_i32_0 : i32, i32
  }
  func.func @transform_3(%arg0: i32) -> (i32, i32, i32, i32) {
    %c0_i32 = arith.constant 0 : i32
    %c0_i32_0 = arith.constant 0 : i32
    %c0_i32_1 = arith.constant 0 : i32
    %c0_i32_2 = arith.constant 0 : i32
    return %arg0, %c0_i32, %c0_i32_0, %c0_i32_1 : i32, i32, i32, i32
  }
  func.func @transform_4(%arg0: i32) -> (i32, i32) {
    %c0_i32 = arith.constant 0 : i32
    %c0_i32_0 = arith.constant 0 : i32
    %c0_i32_1 = arith.constant 0 : i32
    return %c0_i32, %c0_i32_0 : i32, i32
  }
  func.func @transform_5(%arg0: i32) -> (i32, i32) {
    %c0_i32 = arith.constant 0 : i32
    %c0_i32_0 = arith.constant 0 : i32
    %c0_i32_1 = arith.constant 0 : i32
    return %c0_i32, %c0_i32_0 : i32, i32
  }
  func.func @transform_6(%arg0: i32) -> (i32, i32, i32, i32) {
    %c0_i32 = arith.constant 0 : i32
    %c0_i32_0 = arith.constant 0 : i32
    %c0_i32_1 = arith.constant 0 : i32
    %c0_i32_2 = arith.constant 0 : i32
    return %arg0, %c0_i32, %c0_i32_0, %c0_i32_1 : i32, i32, i32, i32
  }
}

</mosaic_0001>

<llo_original>
// kernel: basic_block_forward.2
$region0: #{basic_block_forward.2}
  #allocation0 [shape = 'u32[]', space=smem, size = 0x4, offset = 0x4, fixed_abs, tag = 'smem constant byte address 0x4 - core index']
  #allocation1 [shape = 'u32[72,128]{1,0:T(1,128)}', space=vmem, size = 0x9000, scoped, tag = 'internal scratch']
  %s0 = inlined_call_operand.vmem [shape: bf16[8,9,9,4], index: 0, kind: input, shape index: {}]
  %s1 = inlined_call_operand.vmem [shape: bf16[9,4,8], index: 1, kind: input, shape index: {}]
  %s2 = inlined_call_operand.vmem [shape: f32[1,8], index: 2, kind: input, shape index: {}]
  %s3 = inlined_call_operand.vmem [shape: bf16[2,8,8,8], index: 3, kind: output, shape index: {}]
  %s4 = sld [smem:[#allocation0]]
  $region45: #{basic_block_forward.2} parent=0
    _
  %s6 = ssub.s32 1, %s4
  %s7 = scalar_select 0, %s6, %s4
  loop: start=0, step=1, limit=4
  $region2: #{basic_block_forward.2} parent=0 // loop_pre_header
    _
  $region3: #{basic_block_forward.2} parent=0 // loop_header
    %s9 = sphi 0, %s13
    %p10 = scmp.ge.s32.totalorder %s9, 4
    %s19 = sphi 0, %s21
    %s22 = sphi 0, %s19
    %s23 = sphi 0, %s22
    %s39 = sphi 0, %s23
    %s43 = sphi 0, %s43
    %s45 = sphi 0, %s43
    %s46 = sphi 0, %s45
    %s60 = sphi 0, %s46
    %s64 = sphi 0, %s64
    %s66 = sphi 0, %s64
    %s67 = sphi 0, %s66
    %s81 = sphi 0, %s67
    %s87 = sphi 0, %s89
    %s90 = sphi 0, %s87
    %s91 = sphi 0, %s90
    %s107 = sphi 0, %s91
  $region4: #{basic_block_forward.2} parent=0 // loop_header_branch
    %12 = sbr.rel (%p10) target = $region8
  $region5: #{basic_block_forward.2} parent=0 // loop_body
    %s14 = ssub.s32 %s9, 1
    %s15 = ssub.s32 %s9, 2
    %s16 = sadd.s32 %s9, 1
    %s17 = ssub.s32 %s9, %s16
    %p18 = scmp.eq.s32.totalorder %s17, 0
    %s20 = sadd.s32 %s19, 1
    %s21 = scalar_select %p18, %s19, %s20
    %p24 = pneg %p18
    %p25 = scmp.eq.s32.totalorder %s9, 1
    %p26 = por %p24, %p25
    %p27 = scmp.ne.s32.totalorder %s19, %s22
    %p28 = scmp.eq.s32.totalorder %s9, 0
    %p29 = por %p27, %p28
    %p30 = scmp.ne.s32.totalorder %s19, %s22
    %p31 = scmp.eq.s32.totalorder %s14, 1
    %p32 = por %p30, %p31
    %p33 = scmp.ne.s32.totalorder %s22, %s23
    %p34 = scmp.eq.s32.totalorder %s14, 0
    %p35 = por %p33, %p34
    %p36 = scmp.ne.s32.totalorder %s22, %s23
    %p37 = scmp.eq.s32.totalorder %s15, 1
    %p38 = por %p36, %p37
    %p40 = scmp.ne.s32.totalorder %s23, %s39
    %p41 = scmp.eq.s32.totalorder %s15, 0
    %p42 = por %p40, %p41
    %s44 = sadd.s32 %s43, 1
    %p47 = scmp.eq.s32.totalorder %s9, 1
    %p48 = scmp.ne.s32.totalorder %s43, %s45
    %p49 = scmp.eq.s32.totalorder %s9, 0
    %p50 = por %p48, %p49
    %p51 = scmp.ne.s32.totalorder %s43, %s45
    %p52 = scmp.eq.s32.totalorder %s14, 1
    %p53 = por %p51, %p52
    %p54 = scmp.ne.s32.totalorder %s45, %s46
    %p55 = scmp.eq.s32.totalorder %s14, 0
    %p56 = por %p54, %p55
    %p57 = scmp.ne.s32.totalorder %s45, %s46
    %p58 = scmp.eq.s32.totalorder %s15, 1
    %p59 = por %p57, %p58
    %p61 = scmp.ne.s32.totalorder %s46, %s60
    %p62 = scmp.eq.s32.totalorder %s15, 0
    %p63 = por %p61, %p62
    %s65 = sadd.s32 %s64, 1
    %p68 = scmp.eq.s32.totalorder %s9, 1
    %p69 = scmp.ne.s32.totalorder %s64, %s66
    %p70 = scmp.eq.s32.totalorder %s9, 0
    %p71 = por %p69, %p70
    %p72 = scmp.ne.s32.totalorder %s64, %s66
    %p73 = scmp.eq.s32.totalorder %s14, 1
    %p74 = por %p72, %p73
    %p75 = scmp.ne.s32.totalorder %s66, %s67
    %p76 = scmp.eq.s32.totalorder %s14, 0
    %p77 = por %p75, %p76
    %p78 = scmp.ne.s32.totalorder %s66, %s67
    %p79 = scmp.eq.s32.totalorder %s15, 1
    %p80 = por %p78, %p79
    %p82 = scmp.ne.s32.totalorder %s67, %s81
    %p83 = scmp.eq.s32.totalorder %s15, 0
    %p84 = por %p82, %p83
    %s85 = ssub.s32 %s9, %s16
    %p86 = scmp.eq.s32.totalorder %s85, 0
    %s88 = sadd.s32 %s87, 1
    %s89 = scalar_select %p86, %s87, %s88
    %p92 = pneg %p86
    %p93 = scmp.eq.s32.totalorder %s9, 1
    %p94 = por %p92, %p93
    %p95 = scmp.ne.s32.totalorder %s87, %s90
    %p96 = scmp.eq.s32.totalorder %s9, 0
    %p97 = por %p95, %p96
    %p98 = scmp.ne.s32.totalorder %s87, %s90
    %p99 = scmp.eq.s32.totalorder %s14, 1
    %p100 = por %p98, %p99
    %p101 = scmp.ne.s32.totalorder %s90, %s91
    %p102 = scmp.eq.s32.totalorder %s14, 0
    %p103 = por %p101, %p102
    %p104 = scmp.ne.s32.totalorder %s90, %s91
    %p105 = scmp.eq.s32.totalorder %s15, 1
    %p106 = por %p104, %p105
    %p108 = scmp.ne.s32.totalorder %s91, %s107
    %p109 = scmp.eq.s32.totalorder %s15, 0
    %p110 = por %p108, %p109
    %p111 = scmp.le.s32.totalorder 1, %s9
    %p112 = scmp.lt.s32.totalorder %s9, 3
    %p113 = pnand %p111, %p112
    %p114 = pneg %p113
    // Predicated region
    $region9: #{basic_block_forward.2} parent=5 // pred_check
      _
    $region10: #{basic_block_forward.2} parent=5 // pred_check_branch
      %116 = sbr.rel (%p113) target = $region12
    $region11: #{basic_block_forward.2} parent=5 // pred_region
      %s117 = ssub.s32 %s9, 1
      // Predicated region
      $region13: #{basic_block_forward.2} parent=11 // pred_check
        %p118 = pneg %p56
      $region14: #{basic_block_forward.2} parent=11 // pred_check_branch
        %120 = sbr.rel (%p118) target = $region16
      $region15: #{basic_block_forward.2} parent=11 // pred_region
        _
      $region16: #{basic_block_forward.2} parent=11 // pred_fallthru
        _
      // Predicated region
      $region17: #{basic_block_forward.2} parent=11 // pred_check
        %p121 = pneg %p77
      $region18: #{basic_block_forward.2} parent=11 // pred_check_branch
        %123 = sbr.rel (%p121) target = $region20
      $region19: #{basic_block_forward.2} parent=11 // pred_region
        _
      $region20: #{basic_block_forward.2} parent=11 // pred_fallthru
        _
    $region12: #{basic_block_forward.2} parent=5 // pred_fallthru
      _
    %p124 = scmp.lt.s32.totalorder %s9, 2
    // Predicated region
    $region21: #{basic_block_forward.2} parent=5 // pred_check
      %p125 = pneg %p124
    $region22: #{basic_block_forward.2} parent=5 // pred_check_branch
      %127 = sbr.rel (%p125) target = $region24
    $region23: #{basic_block_forward.2} parent=5 // pred_region
      // Predicated region
      $region25: #{basic_block_forward.2} parent=23 // pred_check
        %p128 = pneg %p29
      $region26: #{basic_block_forward.2} parent=23 // pred_check_branch
        %130 = sbr.rel (%p128) target = $region28
      $region27: #{basic_block_forward.2} parent=23 // pred_region
        %s131 = smul.u32 4, %s9
        %p132 = scmp.lt.s32.totalorder %s131, 7
        %s133 = scalar_select %p132, %s131, 7
        %s134 = smul.addr %s133, 18
        %s135 = smul.addr %s134, 4
        %s136 = scalar_lea.vmem %s0, %s135
        %s137 = smul.u32 4, %s9
      $region28: #{basic_block_forward.2} parent=23 // pred_fallthru
        _
    $region24: #{basic_block_forward.2} parent=5 // pred_fallthru
      _
    %p138 = scmp.le.s32.totalorder 1, %s9
    %p139 = scmp.lt.s32.totalorder %s9, 3
    %p140 = pnand %p138, %p139
    %p141 = pneg %p140
    // Predicated region
    $region29: #{basic_block_forward.2} parent=5 // pred_check
      _
    $region30: #{basic_block_forward.2} parent=5 // pred_check_branch
      %143 = sbr.rel (%p140) target = $region32
    $region31: #{basic_block_forward.2} parent=5 // pred_region
      %s144 = ssub.s32 %s9, 1
      %s145 = smul.u32 4, %s14
      %p146 = scmp.lt.s32.totalorder %s145, 7
      %s147 = scalar_select %p146, %s145, 7
      %s148 = smul.addr %s147, 18
      %s149 = smul.addr %s148, 4
      %s150 = scalar_lea.vmem %s0, %s149
      %p151 = pneg %p35
      %p152 = pneg %p32
      %p153 = pneg %p56
      %p154 = pneg %p53
      %p155 = pneg %p77
      %p156 = pneg %p74
      %p157 = pneg %p103
      %p158 = pneg %p100
      %p159 = scmp.lt.s32.totalorder %s14, 1
      %s160 = scalar_select %p159, %s14, 1
      %s161 = smul.addr %s160, 8
      %s162 = smul.addr %s161, 4
      %s163 = scalar_lea.vmem %s3, %s162
      %s164 = smul.u32 4, %s14
      %p165 = scmp.lt.s32.totalorder %s164, 7
      %s166 = scalar_select %p165, %s164, 7
      %s167 = smul.addr %s166, 18
      %s168 = smul.addr %s167, 4
      %s169 = scalar_lea.vmem %s0, %s168
      %s170 = smul.u32 4, %s14
      %p171 = scmp.lt.s32.totalorder %s14, 1
      %s172 = scalar_select %p171, %s14, 1
      %s173 = smul.addr %s172, 8
      %s174 = smul.addr %s173, 4
      %s175 = scalar_lea.vmem %s3, %s174
      %v177 = vld [vmem:[%s169] sm:$0xf]
      %v178 = vld [vmem:[%s169 + $0x8] sm:$0xf]
      %v179 = vld [vmem:[%s169 + $0x10] sm:$0xf]
      %v180 = vld [vmem:[%s169 + $0x18] sm:$0xf]
      %v181 = vld [vmem:[%s169 + $0x20] sm:$0xf]
      %v182 = vld [vmem:[%s169 + $0x28] sm:$0xf]
      %v183 = vld [vmem:[%s169 + $0x30] sm:$0xf]
      %v184 = vld [vmem:[%s169 + $0x38] sm:$0xf]
      %v185 = vld [vmem:[%s1] sm:$0x3]
      %s186 = scalar_lea.vmem %s169, 72
      %v187 = vld [vmem:[%s186] sm:$0xf]
      %v188 = vld [vmem:[%s186 + $0x8] sm:$0xf]
      %v189 = vld [vmem:[%s186 + $0x10] sm:$0xf]
      %v190 = vld [vmem:[%s186 + $0x18] sm:$0xf]
      %v191 = vld [vmem:[%s186 + $0x20] sm:$0xf]
      %v192 = vld [vmem:[%s186 + $0x28] sm:$0xf]
      %v193 = vld [vmem:[%s186 + $0x30] sm:$0xf]
      %v194 = vld [vmem:[%s186 + $0x38] sm:$0xf]
      %s195 = scalar_lea.vmem %s1, 2
      %v196 = vld [vmem:[%s195] sm:$0x3]
      %v205 = vunpack.c.l.b16 %v187
      %v206 = vunpack.c.l.b16 %v188
      %v207 = vunpack.c.l.b16 %v189
      %v208 = vunpack.c.l.b16 %v190
      %v209 = vunpack.c.l.b16 %v191
      %v210 = vunpack.c.l.b16 %v192
      %v211 = vunpack.c.l.b16 %v193
      %v212 = vunpack.c.l.b16 %v194
      %v213 = vpack.c.b16 %v206, %v205
      %v214 = vpack.c.b16 %v208, %v207
      %v215 = vpack.c.b16 %v210, %v209
      %v216 = vpack.c.b16 %v212, %v211
      %vm217 = vcmask 31744
      %v219 = vsel %vm217, %v213, 0
      %v222 = vsel %vm217, %v214, 0
      %v225 = vsel %vm217, %v215, 0
      %v228 = vsel %vm217, %v216, 0
      %vm230 = vcmask 1041408
      %v232 = vsel %vm230, %v196, 0
      %234 = vmatpush.bf16.msra.mxu0 0
      %235 = vmatpush.bf16.msra.mxu0 0
      %236 = vmatpush.bf16.msra.mxu0 0
      %237 = vmatpush.bf16.msra.mxu0 0
      %238 = vmatpush.bf16.msra.mxu0 0
      %239 = vmatpush.bf16.msra.mxu0 0
      %240 = vmatpush.bf16.msra.mxu0 0
      %241 = vmatpush.bf16.msra.mxu0 %v232
      %242 = vmatmul.bf16.gmra.mxu0 %v219
      %v243 = vpop.f32.mrf.mxu0
      %v244 = vadd.f32 0.0, %v243
      %v245 = vpop.f32.mrf.mxu0
      %v246 = vadd.f32 0.0, %v245
      %247 = vmatmul.bf16.gmra.mxu0 %v222
      %v248 = vpop.f32.mrf.mxu0
      %v249 = vadd.f32 0.0, %v248
      %v250 = vpop.f32.mrf.mxu0
      %v251 = vadd.f32 0.0, %v250
      %252 = vmatmul.bf16.gmra.mxu0 %v225
      %v253 = vpop.f32.mrf.mxu0
      %v254 = vadd.f32 0.0, %v253
      %v255 = vpop.f32.mrf.mxu0
      %v256 = vadd.f32 0.0, %v255
      %257 = vmatmul.bf16.gmra.mxu0 %v228
      %v258 = vpop.f32.mrf.mxu0
      %v259 = vadd.f32 0.0, %v258
      %v260 = vpop.f32.mrf.mxu0
      %v261 = vadd.f32 0.0, %v260
      %262 = vdwg.mxu0
      %v271 = vunpack.c.l.b16 %v177
      %v272 = vunpack.c.l.b16 %v178
      %v273 = vunpack.c.l.b16 %v179
      %v274 = vunpack.c.l.b16 %v180
      %v275 = vunpack.c.l.b16 %v181
      %v276 = vunpack.c.l.b16 %v182
      %v277 = vunpack.c.l.b16 %v183
      %v278 = vunpack.c.l.b16 %v184
      %v279 = vpack.c.b16 %v272, %v271
      %v280 = vpack.c.b16 %v274, %v273
      %v281 = vpack.c.b16 %v276, %v275
      %v282 = vpack.c.b16 %v278, %v277
      %v284 = vsel %vm217, %v279, 0
      %v287 = vsel %vm217, %v280, 0
      %v290 = vsel %vm217, %v281, 0
      %v293 = vsel %vm217, %v282, 0
      %v296 = vsel %vm230, %v185, 0
      %298 = vmatpush.bf16.msra.mxu0 0
      %299 = vmatpush.bf16.msra.mxu0 0
      %300 = vmatpush.bf16.msra.mxu0 0
      %301 = vmatpush.bf16.msra.mxu0 0
      %302 = vmatpush.bf16.msra.mxu0 0
      %303 = vmatpush.bf16.msra.mxu0 0
      %304 = vmatpush.bf16.msra.mxu0 0
      %305 = vmatpush.bf16.msra.mxu0 %v296
      %306 = vmatmul.bf16.gmra.mxu0 %v284
      %v307 = vpop.f32.mrf.mxu0
      %v308 = vadd.f32 %v244, %v307
      %v309 = vpop.f32.mrf.mxu0
      %v310 = vadd.f32 %v246, %v309
      %311 = vmatmul.bf16.gmra.mxu0 %v287
      %v312 = vpop.f32.mrf.mxu0
      %v313 = vadd.f32 %v249, %v312
      %v314 = vpop.f32.mrf.mxu0
      %v315 = vadd.f32 %v251, %v314
      %316 = vmatmul.bf16.gmra.mxu0 %v290
      %v317 = vpop.f32.mrf.mxu0
      %v318 = vadd.f32 %v254, %v317
      %v319 = vpop.f32.mrf.mxu0
      %v320 = vadd.f32 %v256, %v319
      %321 = vmatmul.bf16.gmra.mxu0 %v293
      %v322 = vpop.f32.mrf.mxu0
      %v323 = vadd.f32 %v259, %v322
      %v324 = vpop.f32.mrf.mxu0
      %v325 = vadd.f32 %v261, %v324
      %326 = vdwg.mxu0
      %v327 = vld [vmem:[%s169] sm:$0xf]
      %v328 = vld [vmem:[%s169 + $0x4] sm:$0x1]
      %v329 = vld [vmem:[%s169 + $0x8] sm:$0xf]
      %v330 = vld [vmem:[%s169 + $0xc] sm:$0x1]
      %v331 = vld [vmem:[%s169 + $0x10] sm:$0xf]
      %v332 = vld [vmem:[%s169 + $0x14] sm:$0x1]
      %v333 = vld [vmem:[%s169 + $0x18] sm:$0xf]
      %v334 = vld [vmem:[%s169 + $0x1c] sm:$0x1]
      %v335 = vld [vmem:[%s169 + $0x20] sm:$0xf]
      %v336 = vld [vmem:[%s169 + $0x24] sm:$0x1]
      %v337 = vld [vmem:[%s169 + $0x28] sm:$0xf]
      %v338 = vld [vmem:[%s169 + $0x2c] sm:$0x1]
      %v339 = vld [vmem:[%s169 + $0x30] sm:$0xf]
      %v340 = vld [vmem:[%s169 + $0x34] sm:$0x1]
      %v341 = vld [vmem:[%s169 + $0x38] sm:$0xf]
      %v342 = vld [vmem:[%s169 + $0x3c] sm:$0x1]
      %vm343 = vsmask.f32 3328
      %vm344 = vsmask.f32 7440
      %vm345 = vmor %vm343, %vm344
      %v347 = vshrl.u32 %v327, 16
      %v349 = vrot.slane %v347, 4
      %v350 = vshll.u32 %v327, 16
      %v352 = vrot.slane %v350, 5
      %v353 = vor.u32 %v349, %v352
      %v354 = vrot.slane %v353, 4
      %v356 = vshll.u32 %v328, 16
      %v358 = vrot.slane %v356, 5
      %v359 = vsel %vm345, %v354, %v358
      %v361 = vshrl.u32 %v329, 16
      %v363 = vrot.slane %v361, 4
      %v364 = vshll.u32 %v329, 16
      %v366 = vrot.slane %v364, 5
      %v367 = vor.u32 %v363, %v366
      %v368 = vrot.slane %v367, 4
      %v370 = vshll.u32 %v330, 16
      %v372 = vrot.slane %v370, 5
      %v373 = vsel %vm345, %v368, %v372
      %v375 = vshrl.u32 %v331, 16
      %v377 = vrot.slane %v375, 4
      %v378 = vshll.u32 %v331, 16
      %v380 = vrot.slane %v378, 5
      %v381 = vor.u32 %v377, %v380
      %v382 = vrot.slane %v381, 4
      %v384 = vshll.u32 %v332, 16
      %v386 = vrot.slane %v384, 5
      %v387 = vsel %vm345, %v382, %v386
      %v389 = vshrl.u32 %v333, 16
      %v391 = vrot.slane %v389, 4
      %v392 = vshll.u32 %v333, 16
      %v394 = vrot.slane %v392, 5
      %v395 = vor.u32 %v391, %v394
      %v396 = vrot.slane %v395, 4
      %v398 = vshll.u32 %v334, 16
      %v400 = vrot.slane %v398, 5
      %v401 = vsel %vm345, %v396, %v400
      %v403 = vshrl.u32 %v335, 16
      %v405 = vrot.slane %v403, 4
      %v406 = vshll.u32 %v335, 16
      %v408 = vrot.slane %v406, 5
      %v409 = vor.u32 %v405, %v408
      %v410 = vrot.slane %v409, 4
      %v412 = vshll.u32 %v336, 16
      %v414 = vrot.slane %v412, 5
      %v415 = vsel %vm345, %v410, %v414
      %v417 = vshrl.u32 %v337, 16
      %v419 = vrot.slane %v417, 4
      %v420 = vshll.u32 %v337, 16
      %v422 = vrot.slane %v420, 5
      %v423 = vor.u32 %v419, %v422
      %v424 = vrot.slane %v423, 4
      %v426 = vshll.u32 %v338, 16
      %v428 = vrot.slane %v426, 5
      %v429 = vsel %vm345, %v424, %v428
      %v431 = vshrl.u32 %v339, 16
      %v433 = vrot.slane %v431, 4
      %v434 = vshll.u32 %v339, 16
      %v436 = vrot.slane %v434, 5
      %v437 = vor.u32 %v433, %v436
      %v438 = vrot.slane %v437, 4
      %v440 = vshll.u32 %v340, 16
      %v442 = vrot.slane %v440, 5
      %v443 = vsel %vm345, %v438, %v442
      %v445 = vshrl.u32 %v341, 16
      %v447 = vrot.slane %v445, 4
      %v448 = vshll.u32 %v341, 16
      %v450 = vrot.slane %v448, 5
      %v451 = vor.u32 %v447, %v450
      %v452 = vrot.slane %v451, 4
      %v454 = vshll.u32 %v342, 16
      %v456 = vrot.slane %v454, 5
      %v457 = vsel %vm345, %v452, %v456
      %s458 = scalar_lea.vmem %s1, 4
      %v459 = vld [vmem:[%s458] sm:$0x3]
      %v460 = vunpack.c.l.b16 %v359
      %v461 = vunpack.c.l.b16 %v373
      %v462 = vunpack.c.l.b16 %v387
      %v463 = vunpack.c.l.b16 %v401
      %v464 = vunpack.c.l.b16 %v415
      %v465 = vunpack.c.l.b16 %v429
      %v466 = vunpack.c.l.b16 %v443
      %v467 = vunpack.c.l.b16 %v457
      %v468 = vpack.c.b16 %v461, %v460
      %v469 = vpack.c.b16 %v463, %v462
      %v470 = vpack.c.b16 %v465, %v464
      %v471 = vpack.c.b16 %v467, %v466
      %v473 = vsel %vm217, %v468, 0
      %v476 = vsel %vm217, %v469, 0
      %v479 = vsel %vm217, %v470, 0
      %v482 = vsel %vm217, %v471, 0
      %v485 = vsel %vm230, %v459, 0
      %487 = vmatpush.bf16.msra.mxu0 0
      %488 = vmatpush.bf16.msra.mxu0 0
      %489 = vmatpush.bf16.msra.mxu0 0
      %490 = vmatpush.bf16.msra.mxu0 0
      %491 = vmatpush.bf16.msra.mxu0 0
      %492 = vmatpush.bf16.msra.mxu0 0
      %493 = vmatpush.bf16.msra.mxu0 0
      %494 = vmatpush.bf16.msra.mxu0 %v485
      %495 = vmatmul.bf16.gmra.mxu0 %v473
      %v496 = vpop.f32.mrf.mxu0
      %v497 = vadd.f32 0.0, %v496
      %v498 = vpop.f32.mrf.mxu0
      %v499 = vadd.f32 0.0, %v498
      %500 = vmatmul.bf16.gmra.mxu0 %v476
      %v501 = vpop.f32.mrf.mxu0
      %v502 = vadd.f32 0.0, %v501
      %v503 = vpop.f32.mrf.mxu0
      %v504 = vadd.f32 0.0, %v503
      %505 = vmatmul.bf16.gmra.mxu0 %v479
      %v506 = vpop.f32.mrf.mxu0
      %v507 = vadd.f32 0.0, %v506
      %v508 = vpop.f32.mrf.mxu0
      %v509 = vadd.f32 0.0, %v508
      %510 = vmatmul.bf16.gmra.mxu0 %v482
      %v511 = vpop.f32.mrf.mxu0
      %v512 = vadd.f32 0.0, %v511
      %v513 = vpop.f32.mrf.mxu0
      %v514 = vadd.f32 0.0, %v513
      %515 = vdwg.mxu0
      %v516 = vadd.f32 %v308, %v497
      %v517 = vadd.f32 %v310, %v499
      %v518 = vadd.f32 %v313, %v502
      %v519 = vadd.f32 %v315, %v504
      %v520 = vadd.f32 %v318, %v507
      %v521 = vadd.f32 %v320, %v509
      %v522 = vadd.f32 %v323, %v512
      %v523 = vadd.f32 %v325, %v514
      %s524 = scalar_lea.vmem %s169, 144
      %v525 = vld [vmem:[%s524] sm:$0xf]
      %v526 = vld [vmem:[%s524 + $0x8] sm:$0xf]
      %v527 = vld [vmem:[%s524 + $0x10] sm:$0xf]
      %v528 = vld [vmem:[%s524 + $0x18] sm:$0xf]
      %v529 = vld [vmem:[%s524 + $0x20] sm:$0xf]
      %v530 = vld [vmem:[%s524 + $0x28] sm:$0xf]
      %v531 = vld [vmem:[%s524 + $0x30] sm:$0xf]
      %v532 = vld [vmem:[%s524 + $0x38] sm:$0xf]
      %s533 = scalar_lea.vmem %s1, 6
      %v534 = vld [vmem:[%s533] sm:$0x3]
      %v543 = vunpack.c.l.b16 %v525
      %v544 = vunpack.c.l.b16 %v526
      %v545 = vunpack.c.l.b16 %v527
      %v546 = vunpack.c.l.b16 %v528
      %v547 = vunpack.c.l.b16 %v529
      %v548 = vunpack.c.l.b16 %v530
      %v549 = vunpack.c.l.b16 %v531
      %v550 = vunpack.c.l.b16 %v532
      %v551 = vpack.c.b16 %v544, %v543
      %v552 = vpack.c.b16 %v546, %v545
      %v553 = vpack.c.b16 %v548, %v547
      %v554 = vpack.c.b16 %v550, %v549
      %v556 = vsel %vm217, %v551, 0
      %v559 = vsel %vm217, %v552, 0
      %v562 = vsel %vm217, %v553, 0
      %v565 = vsel %vm217, %v554, 0
      %v568 = vsel %vm230, %v534, 0
      %570 = vmatpush.bf16.msra.mxu0 0
      %571 = vmatpush.bf16.msra.mxu0 0
      %572 = vmatpush.bf16.msra.mxu0 0
      %573 = vmatpush.bf16.msra.mxu0 0
      %574 = vmatpush.bf16.msra.mxu0 0
      %575 = vmatpush.bf16.msra.mxu0 0
      %576 = vmatpush.bf16.msra.mxu0 0
      %577 = vmatpush.bf16.msra.mxu0 %v568
      %578 = vmatmul.bf16.gmra.mxu0 %v556
      %v579 = vpop.f32.mrf.mxu0
      %v580 = vadd.f32 0.0, %v579
      %v581 = vpop.f32.mrf.mxu0
      %v582 = vadd.f32 0.0, %v581
      %583 = vmatmul.bf16.gmra.mxu0 %v559
      %v584 = vpop.f32.mrf.mxu0
      %v585 = vadd.f32 0.0, %v584
      %v586 = vpop.f32.mrf.mxu0
      %v587 = vadd.f32 0.0, %v586
      %588 = vmatmul.bf16.gmra.mxu0 %v562
      %v589 = vpop.f32.mrf.mxu0
      %v590 = vadd.f32 0.0, %v589
      %v591 = vpop.f32.mrf.mxu0
      %v592 = vadd.f32 0.0, %v591
      %593 = vmatmul.bf16.gmra.mxu0 %v565
      %v594 = vpop.f32.mrf.mxu0
      %v595 = vadd.f32 0.0, %v594
      %v596 = vpop.f32.mrf.mxu0
      %v597 = vadd.f32 0.0, %v596
      %598 = vdwg.mxu0
      %v599 = vadd.f32 %v516, %v580
      %v600 = vadd.f32 %v517, %v582
      %v601 = vadd.f32 %v518, %v585
      %v602 = vadd.f32 %v519, %v587
      %v603 = vadd.f32 %v520, %v590
      %v604 = vadd.f32 %v521, %v592
      %v605 = vadd.f32 %v522, %v595
      %v606 = vadd.f32 %v523, %v597
      %s607 = scalar_lea.vmem %s169, 216
      %v608 = vld [vmem:[%s607] sm:$0xf]
      %v609 = vld [vmem:[%s607 + $0x8] sm:$0xf]
      %v610 = vld [vmem:[%s607 + $0x10] sm:$0xf]
      %v611 = vld [vmem:[%s607 + $0x18] sm:$0xf]
      %v612 = vld [vmem:[%s607 + $0x20] sm:$0xf]
      %v613 = vld [vmem:[%s607 + $0x28] sm:$0xf]
      %v614 = vld [vmem:[%s607 + $0x30] sm:$0xf]
      %v615 = vld [vmem:[%s607 + $0x38] sm:$0xf]
      %s616 = scalar_lea.vmem %s1, 8
      %v617 = vld [vmem:[%s616] sm:$0x3]
      %v626 = vunpack.c.l.b16 %v608
      %v627 = vunpack.c.l.b16 %v609
      %v628 = vunpack.c.l.b16 %v610
      %v629 = vunpack.c.l.b16 %v611
      %v630 = vunpack.c.l.b16 %v612
      %v631 = vunpack.c.l.b16 %v613
      %v632 = vunpack.c.l.b16 %v614
      %v633 = vunpack.c.l.b16 %v615
      %v634 = vpack.c.b16 %v627, %v626
      %v635 = vpack.c.b16 %v629, %v628
      %v636 = vpack.c.b16 %v631, %v630
      %v637 = vpack.c.b16 %v633, %v632
      %v639 = vsel %vm217, %v634, 0
      %v642 = vsel %vm217, %v635, 0
      %v645 = vsel %vm217, %v636, 0
      %v648 = vsel %vm217, %v637, 0
      %v651 = vsel %vm230, %v617, 0
      %653 = vmatpush.bf16.msra.mxu0 0
      %654 = vmatpush.bf16.msra.mxu0 0
      %655 = vmatpush.bf16.msra.mxu0 0
      %656 = vmatpush.bf16.msra.mxu0 0
      %657 = vmatpush.bf16.msra.mxu0 0
      %658 = vmatpush.bf16.msra.mxu0 0
      %659 = vmatpush.bf16.msra.mxu0 0
      %660 = vmatpush.bf16.msra.mxu0 %v651
      %661 = vmatmul.bf16.gmra.mxu0 %v639
      %v662 = vpop.f32.mrf.mxu0
      %v663 = vadd.f32 0.0, %v662
      %v664 = vpop.f32.mrf.mxu0
      %v665 = vadd.f32 0.0, %v664
      %666 = vmatmul.bf16.gmra.mxu0 %v642
      %v667 = vpop.f32.mrf.mxu0
      %v668 = vadd.f32 0.0, %v667
      %v669 = vpop.f32.mrf.mxu0
      %v670 = vadd.f32 0.0, %v669
      %671 = vmatmul.bf16.gmra.mxu0 %v645
      %v672 = vpop.f32.mrf.mxu0
      %v673 = vadd.f32 0.0, %v672
      %v674 = vpop.f32.mrf.mxu0
      %v675 = vadd.f32 0.0, %v674
      %676 = vmatmul.bf16.gmra.mxu0 %v648
      %v677 = vpop.f32.mrf.mxu0
      %v678 = vadd.f32 0.0, %v677
      %v679 = vpop.f32.mrf.mxu0
      %v680 = vadd.f32 0.0, %v679
      %681 = vdwg.mxu0
      %v682 = vadd.f32 %v599, %v663
      %v683 = vadd.f32 %v600, %v665
      %v684 = vadd.f32 %v601, %v668
      %v685 = vadd.f32 %v602, %v670
      %v686 = vadd.f32 %v603, %v673
      %v687 = vadd.f32 %v604, %v675
      %v688 = vadd.f32 %v605, %v678
      %v689 = vadd.f32 %v606, %v680
      %v690 = vld [vmem:[%s524] sm:$0xf]
      %v691 = vld [vmem:[%s524 + $0x4] sm:$0x1]
      %v692 = vld [vmem:[%s524 + $0x8] sm:$0xf]
      %v693 = vld [vmem:[%s524 + $0xc] sm:$0x1]
      %v694 = vld [vmem:[%s524 + $0x10] sm:$0xf]
      %v695 = vld [vmem:[%s524 + $0x14] sm:$0x1]
      %v696 = vld [vmem:[%s524 + $0x18] sm:$0xf]
      %v697 = vld [vmem:[%s524 + $0x1c] sm:$0x1]
      %v698 = vld [vmem:[%s524 + $0x20] sm:$0xf]
      %v699 = vld [vmem:[%s524 + $0x24] sm:$0x1]
      %v700 = vld [vmem:[%s524 + $0x28] sm:$0xf]
      %v701 = vld [vmem:[%s524 + $0x2c] sm:$0x1]
      %v702 = vld [vmem:[%s524 + $0x30] sm:$0xf]
      %v703 = vld [vmem:[%s524 + $0x34] sm:$0x1]
      %v704 = vld [vmem:[%s524 + $0x38] sm:$0xf]
      %v705 = vld [vmem:[%s524 + $0x3c] sm:$0x1]
      %v707 = vshrl.u32 %v690, 16
      %v709 = vrot.slane %v707, 4
      %v710 = vshll.u32 %v690, 16
      %v712 = vrot.slane %v710, 5
      %v713 = vor.u32 %v709, %v712
      %v714 = vrot.slane %v713, 4
      %v716 = vshll.u32 %v691, 16
      %v718 = vrot.slane %v716, 5
      %v719 = vsel %vm345, %v714, %v718
      %v721 = vshrl.u32 %v692, 16
      %v723 = vrot.slane %v721, 4
      %v724 = vshll.u32 %v692, 16
      %v726 = vrot.slane %v724, 5
      %v727 = vor.u32 %v723, %v726
      %v728 = vrot.slane %v727, 4
      %v730 = vshll.u32 %v693, 16
      %v732 = vrot.slane %v730, 5
      %v733 = vsel %vm345, %v728, %v732
      %v735 = vshrl.u32 %v694, 16
      %v737 = vrot.slane %v735, 4
      %v738 = vshll.u32 %v694, 16
      %v740 = vrot.slane %v738, 5
      %v741 = vor.u32 %v737, %v740
      %v742 = vrot.slane %v741, 4
      %v744 = vshll.u32 %v695, 16
      %v746 = vrot.slane %v744, 5
      %v747 = vsel %vm345, %v742, %v746
      %v749 = vshrl.u32 %v696, 16
      %v751 = vrot.slane %v749, 4
      %v752 = vshll.u32 %v696, 16
      %v754 = vrot.slane %v752, 5
      %v755 = vor.u32 %v751, %v754
      %v756 = vrot.slane %v755, 4
      %v758 = vshll.u32 %v697, 16
      %v760 = vrot.slane %v758, 5
      %v761 = vsel %vm345, %v756, %v760
      %v763 = vshrl.u32 %v698, 16
      %v765 = vrot.slane %v763, 4
      %v766 = vshll.u32 %v698, 16
      %v768 = vrot.slane %v766, 5
      %v769 = vor.u32 %v765, %v768
      %v770 = vrot.slane %v769, 4
      %v772 = vshll.u32 %v699, 16
      %v774 = vrot.slane %v772, 5
      %v775 = vsel %vm345, %v770, %v774
      %v777 = vshrl.u32 %v700, 16
      %v779 = vrot.slane %v777, 4
      %v780 = vshll.u32 %v700, 16
      %v782 = vrot.slane %v780, 5
      %v783 = vor.u32 %v779, %v782
      %v784 = vrot.slane %v783, 4
      %v786 = vshll.u32 %v701, 16
      %v788 = vrot.slane %v786, 5
      %v789 = vsel %vm345, %v784, %v788
      %v791 = vshrl.u32 %v702, 16
      %v793 = vrot.slane %v791, 4
      %v794 = vshll.u32 %v702, 16
      %v796 = vrot.slane %v794, 5
      %v797 = vor.u32 %v793, %v796
      %v798 = vrot.slane %v797, 4
      %v800 = vshll.u32 %v703, 16
      %v802 = vrot.slane %v800, 5
      %v803 = vsel %vm345, %v798, %v802
      %v805 = vshrl.u32 %v704, 16
      %v807 = vrot.slane %v805, 4
      %v808 = vshll.u32 %v704, 16
      %v810 = vrot.slane %v808, 5
      %v811 = vor.u32 %v807, %v810
      %v812 = vrot.slane %v811, 4
      %v814 = vshll.u32 %v705, 16
      %v816 = vrot.slane %v814, 5
      %v817 = vsel %vm345, %v812, %v816
      %s818 = scalar_lea.vmem %s1, 10
      %v819 = vld [vmem:[%s818] sm:$0x3]
      %v820 = vunpack.c.l.b16 %v719
      %v821 = vunpack.c.l.b16 %v733
      %v822 = vunpack.c.l.b16 %v747
      %v823 = vunpack.c.l.b16 %v761
      %v824 = vunpack.c.l.b16 %v775
      %v825 = vunpack.c.l.b16 %v789
      %v826 = vunpack.c.l.b16 %v803
      %v827 = vunpack.c.l.b16 %v817
      %v828 = vpack.c.b16 %v821, %v820
      %v829 = vpack.c.b16 %v823, %v822
      %v830 = vpack.c.b16 %v825, %v824
      %v831 = vpack.c.b16 %v827, %v826
      %v833 = vsel %vm217, %v828, 0
      %v836 = vsel %vm217, %v829, 0
      %v839 = vsel %vm217, %v830, 0
      %v842 = vsel %vm217, %v831, 0
      %v845 = vsel %vm230, %v819, 0
      %847 = vmatpush.bf16.msra.mxu0 0
      %848 = vmatpush.bf16.msra.mxu0 0
      %849 = vmatpush.bf16.msra.mxu0 0
      %850 = vmatpush.bf16.msra.mxu0 0
      %851 = vmatpush.bf16.msra.mxu0 0
      %852 = vmatpush.bf16.msra.mxu0 0
      %853 = vmatpush.bf16.msra.mxu0 0
      %854 = vmatpush.bf16.msra.mxu0 %v845
      %855 = vmatmul.bf16.gmra.mxu0 %v833
      %v856 = vpop.f32.mrf.mxu0
      %v857 = vadd.f32 0.0, %v856
      %v858 = vpop.f32.mrf.mxu0
      %v859 = vadd.f32 0.0, %v858
      %860 = vmatmul.bf16.gmra.mxu0 %v836
      %v861 = vpop.f32.mrf.mxu0
      %v862 = vadd.f32 0.0, %v861
      %v863 = vpop.f32.mrf.mxu0
      %v864 = vadd.f32 0.0, %v863
      %865 = vmatmul.bf16.gmra.mxu0 %v839
      %v866 = vpop.f32.mrf.mxu0
      %v867 = vadd.f32 0.0, %v866
      %v868 = vpop.f32.mrf.mxu0
      %v869 = vadd.f32 0.0, %v868
      %870 = vmatmul.bf16.gmra.mxu0 %v842
      %v871 = vpop.f32.mrf.mxu0
      %v872 = vadd.f32 0.0, %v871
      %v873 = vpop.f32.mrf.mxu0
      %v874 = vadd.f32 0.0, %v873
      %875 = vdwg.mxu0
      %v876 = vadd.f32 %v682, %v857
      %v877 = vadd.f32 %v683, %v859
      %v878 = vadd.f32 %v684, %v862
      %v879 = vadd.f32 %v685, %v864
      %v880 = vadd.f32 %v686, %v867
      %v881 = vadd.f32 %v687, %v869
      %v882 = vadd.f32 %v688, %v872
      %v883 = vadd.f32 %v689, %v874
      %s884 = scalar_lea.vmem %s169, 8
      %v885 = vld [vmem:[%s884] sm:$0xf]
      %v886 = vld [vmem:[%s884 + $0x8] sm:$0xf]
      %v887 = vld [vmem:[%s884 + $0x10] sm:$0xf]
      %v888 = vld [vmem:[%s884 + $0x18] sm:$0xf]
      %v889 = vld [vmem:[%s884 + $0x20] sm:$0xf]
      %v890 = vld [vmem:[%s884 + $0x28] sm:$0xf]
      %v891 = vld [vmem:[%s884 + $0x30] sm:$0xf]
      %v892 = vld [vmem:[%s884 + $0x38] sm:$0xf]
      %s893 = scalar_lea.vmem %s1, 12
      %v894 = vld [vmem:[%s893] sm:$0x3]
      %v903 = vunpack.c.l.b16 %v885
      %v904 = vunpack.c.l.b16 %v886
      %v905 = vunpack.c.l.b16 %v887
      %v906 = vunpack.c.l.b16 %v888
      %v907 = vunpack.c.l.b16 %v889
      %v908 = vunpack.c.l.b16 %v890
      %v909 = vunpack.c.l.b16 %v891
      %v910 = vunpack.c.l.b16 %v892
      %v911 = vpack.c.b16 %v904, %v903
      %v912 = vpack.c.b16 %v906, %v905
      %v913 = vpack.c.b16 %v908, %v907
      %v914 = vpack.c.b16 %v910, %v909
      %v916 = vsel %vm217, %v911, 0
      %v919 = vsel %vm217, %v912, 0
      %v922 = vsel %vm217, %v913, 0
      %v925 = vsel %vm217, %v914, 0
      %v928 = vsel %vm230, %v894, 0
      %930 = vmatpush.bf16.msra.mxu0 0
      %931 = vmatpush.bf16.msra.mxu0 0
      %932 = vmatpush.bf16.msra.mxu0 0
      %933 = vmatpush.bf16.msra.mxu0 0
      %934 = vmatpush.bf16.msra.mxu0 0
      %935 = vmatpush.bf16.msra.mxu0 0
      %936 = vmatpush.bf16.msra.mxu0 0
      %937 = vmatpush.bf16.msra.mxu0 %v928
      %938 = vmatmul.bf16.gmra.mxu0 %v916
      %v939 = vpop.f32.mrf.mxu0
      %v940 = vadd.f32 0.0, %v939
      %v941 = vpop.f32.mrf.mxu0
      %v942 = vadd.f32 0.0, %v941
      %943 = vmatmul.bf16.gmra.mxu0 %v919
      %v944 = vpop.f32.mrf.mxu0
      %v945 = vadd.f32 0.0, %v944
      %v946 = vpop.f32.mrf.mxu0
      %v947 = vadd.f32 0.0, %v946
      %948 = vmatmul.bf16.gmra.mxu0 %v922
      %v949 = vpop.f32.mrf.mxu0
      %v950 = vadd.f32 0.0, %v949
      %v951 = vpop.f32.mrf.mxu0
      %v952 = vadd.f32 0.0, %v951
      %953 = vmatmul.bf16.gmra.mxu0 %v925
      %v954 = vpop.f32.mrf.mxu0
      %v955 = vadd.f32 0.0, %v954
      %v956 = vpop.f32.mrf.mxu0
      %v957 = vadd.f32 0.0, %v956
      %958 = vdwg.mxu0
      %v959 = vadd.f32 %v876, %v940
      %v960 = vadd.f32 %v877, %v942
      %v961 = vadd.f32 %v878, %v945
      %v962 = vadd.f32 %v879, %v947
      %v963 = vadd.f32 %v880, %v950
      %v964 = vadd.f32 %v881, %v952
      %v965 = vadd.f32 %v882, %v955
      %v966 = vadd.f32 %v883, %v957
      %s967 = scalar_lea.vmem %s169, 80
      %v968 = vld [vmem:[%s967] sm:$0xf]
      %v969 = vld [vmem:[%s967 + $0x8] sm:$0xf]
      %v970 = vld [vmem:[%s967 + $0x10] sm:$0xf]
      %v971 = vld [vmem:[%s967 + $0x18] sm:$0xf]
      %v972 = vld [vmem:[%s967 + $0x20] sm:$0xf]
      %v973 = vld [vmem:[%s967 + $0x28] sm:$0xf]
      %v974 = vld [vmem:[%s967 + $0x30] sm:$0xf]
      %v975 = vld [vmem:[%s967 + $0x38] sm:$0xf]
      %s976 = scalar_lea.vmem %s1, 14
      %v977 = vld [vmem:[%s976] sm:$0x3]
      %v986 = vunpack.c.l.b16 %v968
      %v987 = vunpack.c.l.b16 %v969
      %v988 = vunpack.c.l.b16 %v970
      %v989 = vunpack.c.l.b16 %v971
      %v990 = vunpack.c.l.b16 %v972
      %v991 = vunpack.c.l.b16 %v973
      %v992 = vunpack.c.l.b16 %v974
      %v993 = vunpack.c.l.b16 %v975
      %v994 = vpack.c.b16 %v987, %v986
      %v995 = vpack.c.b16 %v989, %v988
      %v996 = vpack.c.b16 %v991, %v990
      %v997 = vpack.c.b16 %v993, %v992
      %v999 = vsel %vm217, %v994, 0
      %v1002 = vsel %vm217, %v995, 0
      %v1005 = vsel %vm217, %v996, 0
      %v1008 = vsel %vm217, %v997, 0
      %v1011 = vsel %vm230, %v977, 0
      %1013 = vmatpush.bf16.msra.mxu0 0
      %1014 = vmatpush.bf16.msra.mxu0 0
      %1015 = vmatpush.bf16.msra.mxu0 0
      %1016 = vmatpush.bf16.msra.mxu0 0
      %1017 = vmatpush.bf16.msra.mxu0 0
      %1018 = vmatpush.bf16.msra.mxu0 0
      %1019 = vmatpush.bf16.msra.mxu0 0
      %1020 = vmatpush.bf16.msra.mxu0 %v1011
      %1021 = vmatmul.bf16.gmra.mxu0 %v999
      %v1022 = vpop.f32.mrf.mxu0
      %v1023 = vadd.f32 0.0, %v1022
      %v1024 = vpop.f32.mrf.mxu0
      %v1025 = vadd.f32 0.0, %v1024
      %1026 = vmatmul.bf16.gmra.mxu0 %v1002
      %v1027 = vpop.f32.mrf.mxu0
      %v1028 = vadd.f32 0.0, %v1027
      %v1029 = vpop.f32.mrf.mxu0
      %v1030 = vadd.f32 0.0, %v1029
      %1031 = vmatmul.bf16.gmra.mxu0 %v1005
      %v1032 = vpop.f32.mrf.mxu0
      %v1033 = vadd.f32 0.0, %v1032
      %v1034 = vpop.f32.mrf.mxu0
      %v1035 = vadd.f32 0.0, %v1034
      %1036 = vmatmul.bf16.gmra.mxu0 %v1008
      %v1037 = vpop.f32.mrf.mxu0
      %v1038 = vadd.f32 0.0, %v1037
      %v1039 = vpop.f32.mrf.mxu0
      %v1040 = vadd.f32 0.0, %v1039
      %1041 = vdwg.mxu0
      %v1042 = vadd.f32 %v959, %v1023
      %v1043 = vadd.f32 %v960, %v1025
      %v1044 = vadd.f32 %v961, %v1028
      %v1045 = vadd.f32 %v962, %v1030
      %v1046 = vadd.f32 %v963, %v1033
      %v1047 = vadd.f32 %v964, %v1035
      %v1048 = vadd.f32 %v965, %v1038
      %v1049 = vadd.f32 %v966, %v1040
      %v1050 = vld [vmem:[%s884] sm:$0xf]
      %v1051 = vld [vmem:[%s884 + $0x4] sm:$0x1]
      %v1052 = vld [vmem:[%s884 + $0x8] sm:$0xf]
      %v1053 = vld [vmem:[%s884 + $0xc] sm:$0x1]
      %v1054 = vld [vmem:[%s884 + $0x10] sm:$0xf]
      %v1055 = vld [vmem:[%s884 + $0x14] sm:$0x1]
      %v1056 = vld [vmem:[%s884 + $0x18] sm:$0xf]
      %v1057 = vld [vmem:[%s884 + $0x1c] sm:$0x1]
      %v1058 = vld [vmem:[%s884 + $0x20] sm:$0xf]
      %v1059 = vld [vmem:[%s884 + $0x24] sm:$0x1]
      %v1060 = vld [vmem:[%s884 + $0x28] sm:$0xf]
      %v1061 = vld [vmem:[%s884 + $0x2c] sm:$0x1]
      %v1062 = vld [vmem:[%s884 + $0x30] sm:$0xf]
      %v1063 = vld [vmem:[%s884 + $0x34] sm:$0x1]
      %v1064 = vld [vmem:[%s884 + $0x38] sm:$0xf]
      %v1065 = vld [vmem:[%s884 + $0x3c] sm:$0x1]
      %v1067 = vshrl.u32 %v1050, 16
      %v1069 = vrot.slane %v1067, 4
      %v1070 = vshll.u32 %v1050, 16
      %v1072 = vrot.slane %v1070, 5
      %v1073 = vor.u32 %v1069, %v1072
      %v1074 = vrot.slane %v1073, 4
      %v1076 = vshll.u32 %v1051, 16
      %v1078 = vrot.slane %v1076, 5
      %v1079 = vsel %vm345, %v1074, %v1078
      %v1081 = vshrl.u32 %v1052, 16
      %v1083 = vrot.slane %v1081, 4
      %v1084 = vshll.u32 %v1052, 16
      %v1086 = vrot.slane %v1084, 5
      %v1087 = vor.u32 %v1083, %v1086
      %v1088 = vrot.slane %v1087, 4
      %v1090 = vshll.u32 %v1053, 16
      %v1092 = vrot.slane %v1090, 5
      %v1093 = vsel %vm345, %v1088, %v1092
      %v1095 = vshrl.u32 %v1054, 16
      %v1097 = vrot.slane %v1095, 4
      %v1098 = vshll.u32 %v1054, 16
      %v1100 = vrot.slane %v1098, 5
      %v1101 = vor.u32 %v1097, %v1100
      %v1102 = vrot.slane %v1101, 4
      %v1104 = vshll.u32 %v1055, 16
      %v1106 = vrot.slane %v1104, 5
      %v1107 = vsel %vm345, %v1102, %v1106
      %v1109 = vshrl.u32 %v1056, 16
      %v1111 = vrot.slane %v1109, 4
      %v1112 = vshll.u32 %v1056, 16
      %v1114 = vrot.slane %v1112, 5
      %v1115 = vor.u32 %v1111, %v1114
      %v1116 = vrot.slane %v1115, 4
      %v1118 = vshll.u32 %v1057, 16
      %v1120 = vrot.slane %v1118, 5
      %v1121 = vsel %vm345, %v1116, %v1120
      %v1123 = vshrl.u32 %v1058, 16
      %v1125 = vrot.slane %v1123, 4
      %v1126 = vshll.u32 %v1058, 16
      %v1128 = vrot.slane %v1126, 5
      %v1129 = vor.u32 %v1125, %v1128
      %v1130 = vrot.slane %v1129, 4
      %v1132 = vshll.u32 %v1059, 16
      %v1134 = vrot.slane %v1132, 5
      %v1135 = vsel %vm345, %v1130, %v1134
      %v1137 = vshrl.u32 %v1060, 16
      %v1139 = vrot.slane %v1137, 4
      %v1140 = vshll.u32 %v1060, 16
      %v1142 = vrot.slane %v1140, 5
      %v1143 = vor.u32 %v1139, %v1142
      %v1144 = vrot.slane %v1143, 4
      %v1146 = vshll.u32 %v1061, 16
      %v1148 = vrot.slane %v1146, 5
      %v1149 = vsel %vm345, %v1144, %v1148
      %v1151 = vshrl.u32 %v1062, 16
      %v1153 = vrot.slane %v1151, 4
      %v1154 = vshll.u32 %v1062, 16
      %v1156 = vrot.slane %v1154, 5
      %v1157 = vor.u32 %v1153, %v1156
      %v1158 = vrot.slane %v1157, 4
      %v1160 = vshll.u32 %v1063, 16
      %v1162 = vrot.slane %v1160, 5
      %v1163 = vsel %vm345, %v1158, %v1162
      %v1165 = vshrl.u32 %v1064, 16
      %v1167 = vrot.slane %v1165, 4
      %v1168 = vshll.u32 %v1064, 16
      %v1170 = vrot.slane %v1168, 5
      %v1171 = vor.u32 %v1167, %v1170
      %v1172 = vrot.slane %v1171, 4
      %v1174 = vshll.u32 %v1065, 16
      %v1176 = vrot.slane %v1174, 5
      %v1177 = vsel %vm345, %v1172, %v1176
      %s1178 = scalar_lea.vmem %s1, 16
      %v1179 = vld [vmem:[%s1178] sm:$0x3]
      %v1180 = vunpack.c.l.b16 %v1079
      %v1181 = vunpack.c.l.b16 %v1093
      %v1182 = vunpack.c.l.b16 %v1107
      %v1183 = vunpack.c.l.b16 %v1121
      %v1184 = vunpack.c.l.b16 %v1135
      %v1185 = vunpack.c.l.b16 %v1149
      %v1186 = vunpack.c.l.b16 %v1163
      %v1187 = vunpack.c.l.b16 %v1177
      %v1188 = vpack.c.b16 %v1181, %v1180
      %v1189 = vpack.c.b16 %v1183, %v1182
      %v1190 = vpack.c.b16 %v1185, %v1184
      %v1191 = vpack.c.b16 %v1187, %v1186
      %v1193 = vsel %vm217, %v1188, 0
      %v1196 = vsel %vm217, %v1189, 0
      %v1199 = vsel %vm217, %v1190, 0
      %v1202 = vsel %vm217, %v1191, 0
      %v1205 = vsel %vm230, %v1179, 0
      %1207 = vmatpush.bf16.msra.mxu0 0
      %1208 = vmatpush.bf16.msra.mxu0 0
      %1209 = vmatpush.bf16.msra.mxu0 0
      %1210 = vmatpush.bf16.msra.mxu0 0
      %1211 = vmatpush.bf16.msra.mxu0 0
      %1212 = vmatpush.bf16.msra.mxu0 0
      %1213 = vmatpush.bf16.msra.mxu0 0
      %1214 = vmatpush.bf16.msra.mxu0 %v1205
      %1215 = vmatmul.bf16.gmra.mxu0 %v1193
      %v1216 = vpop.f32.mrf.mxu0
      %v1217 = vadd.f32 0.0, %v1216
      %v1218 = vpop.f32.mrf.mxu0
      %v1219 = vadd.f32 0.0, %v1218
      %1220 = vmatmul.bf16.gmra.mxu0 %v1196
      %v1221 = vpop.f32.mrf.mxu0
      %v1222 = vadd.f32 0.0, %v1221
      %v1223 = vpop.f32.mrf.mxu0
      %v1224 = vadd.f32 0.0, %v1223
      %1225 = vmatmul.bf16.gmra.mxu0 %v1199
      %v1226 = vpop.f32.mrf.mxu0
      %v1227 = vadd.f32 0.0, %v1226
      %v1228 = vpop.f32.mrf.mxu0
      %v1229 = vadd.f32 0.0, %v1228
      %1230 = vmatmul.bf16.gmra.mxu0 %v1202
      %v1231 = vpop.f32.mrf.mxu0
      %v1232 = vadd.f32 0.0, %v1231
      %v1233 = vpop.f32.mrf.mxu0
      %v1234 = vadd.f32 0.0, %v1233
      %1235 = vdwg.mxu0
      %v1236 = vadd.f32 %v1042, %v1217
      %v1237 = vadd.f32 %v1043, %v1219
      %v1238 = vadd.f32 %v1044, %v1222
      %v1239 = vadd.f32 %v1045, %v1224
      %v1240 = vadd.f32 %v1046, %v1227
      %v1241 = vadd.f32 %v1047, %v1229
      %v1242 = vadd.f32 %v1048, %v1232
      %v1243 = vadd.f32 %v1049, %v1234
      %v1244 = vld [vmem:[%s2] sm:$0x1]
      %v1246 = vperm.slane %v1244, 0
      %v1248 = vadd.f32 %v1236, %v1246
      %v1249 = vadd.f32 %v1237, %v1246
      %v1250 = vadd.f32 %v1238, %v1246
      %v1251 = vadd.f32 %v1239, %v1246
      %v1252 = vadd.f32 %v1240, %v1246
      %v1253 = vadd.f32 %v1241, %v1246
      %v1254 = vadd.f32 %v1242, %v1246
      %v1255 = vadd.f32 %v1243, %v1246
      %v1256 = vmax.f32 %v1248, 0.0
      %v1257 = vmax.f32 %v1249, 0.0
      %v1258 = vmax.f32 %v1250, 0.0
      %v1259 = vmax.f32 %v1251, 0.0
      %v1260 = vmax.f32 %v1252, 0.0
      %v1261 = vmax.f32 %v1253, 0.0
      %v1262 = vmax.f32 %v1254, 0.0
      %v1263 = vmax.f32 %v1255, 0.0
      %v1264 = vpack.c.bf16 %v1256, %v1256
      %v1265 = vpack.c.bf16 %v1257, %v1257
      %v1266 = vpack.c.bf16 %v1258, %v1258
      %v1267 = vpack.c.bf16 %v1259, %v1259
      %v1268 = vpack.c.bf16 %v1260, %v1260
      %v1269 = vpack.c.bf16 %v1261, %v1261
      %v1270 = vpack.c.bf16 %v1262, %v1262
      %v1271 = vpack.c.bf16 %v1263, %v1263
      %vm1272 = vcmask 60416
      %1273 = vst.msk [vmem:[%s175] sm:$0xf] %vm1272, %v1264
      %1274 = vst.msk [vmem:[%s175 + $0x4] sm:$0xf] %vm1272, %v1265
      %1275 = vst.msk [vmem:[%s175 + $0x8] sm:$0xf] %vm1272, %v1266
      %1276 = vst.msk [vmem:[%s175 + $0xc] sm:$0xf] %vm1272, %v1267
      %1277 = vst.msk [vmem:[%s175 + $0x10] sm:$0xf] %vm1272, %v1268
      %1278 = vst.msk [vmem:[%s175 + $0x14] sm:$0xf] %vm1272, %v1269
      %1279 = vst.msk [vmem:[%s175 + $0x18] sm:$0xf] %vm1272, %v1270
      %1280 = vst.msk [vmem:[%s175 + $0x1c] sm:$0xf] %vm1272, %v1271
      %p1281 = scmp.lt.s32.totalorder %s14, 1
      %s1282 = scalar_select %p1281, %s14, 1
      %s1283 = smul.addr %s1282, 8
      %s1284 = smul.addr %s1283, 4
      %s1285 = scalar_lea.vmem %s3, %s1284
      // Predicated region
      $region33: #{basic_block_forward.2} parent=31 // pred_check
        %p1286 = pneg %p100
      $region34: #{basic_block_forward.2} parent=31 // pred_check_branch
        %1288 = sbr.rel (%p1286) target = $region36
      $region35: #{basic_block_forward.2} parent=31 // pred_region
        _
      $region36: #{basic_block_forward.2} parent=31 // pred_fallthru
        _
    $region32: #{basic_block_forward.2} parent=5 // pred_fallthru
      _
    %p1289 = scmp.le.s32.totalorder 2, %s9
    // Predicated region
    $region37: #{basic_block_forward.2} parent=5 // pred_check
      %p1290 = pneg %p1289
    $region38: #{basic_block_forward.2} parent=5 // pred_check_branch
      %1292 = sbr.rel (%p1290) target = $region40
    $region39: #{basic_block_forward.2} parent=5 // pred_region
      %s1293 = ssub.s32 %s9, 2
      // Predicated region
      $region41: #{basic_block_forward.2} parent=39 // pred_check
        %p1294 = pneg %p106
      $region42: #{basic_block_forward.2} parent=39 // pred_check_branch
        %1296 = sbr.rel (%p1294) target = $region44
      $region43: #{basic_block_forward.2} parent=39 // pred_region
        %p1297 = scmp.lt.s32.totalorder %s15, 1
        %s1298 = scalar_select %p1297, %s15, 1
        %s1299 = smul.addr %s1298, 8
        %s1300 = smul.addr %s1299, 4
        %s1301 = scalar_lea.vmem %s3, %s1300
      $region44: #{basic_block_forward.2} parent=39 // pred_fallthru
        _
    $region40: #{basic_block_forward.2} parent=5 // pred_fallthru
      _
  $region6: #{basic_block_forward.2} parent=0 // loop_footer
    %s13 = sadd.s32 1, %s9
  $region7: #{basic_block_forward.2} parent=0 // loop_footer_branch
    %8 = sbr.rel target = $region3
  $region8: #{basic_block_forward.2} parent=0 // loop_exit
    _

// kernel: basic_block_forward.3
$region0: #{basic_block_forward.3}
  #allocation0 [shape = 'u32[]', space=smem, size = 0x4, offset = 0x4, fixed_abs, tag = 'smem constant byte address 0x4 - core index']
  #allocation1 [shape = 'u32[72,128]{1,0:T(1,128)}', space=vmem, size = 0x9000, scoped, tag = 'internal scratch']
  %s0 = inlined_call_operand.vmem [shape: bf16[2,10,10,8], index: 0, kind: input, shape index: {}]
  %s1 = inlined_call_operand.vmem [shape: bf16[9,8,8], index: 1, kind: input, shape index: {}]
  %s2 = inlined_call_operand.vmem [shape: f32[1,8], index: 2, kind: input, shape index: {}]
  %s3 = inlined_call_operand.vmem [shape: bf16[2,8,8,4], index: 3, kind: input, shape index: {}]
  %s4 = inlined_call_operand.vmem [shape: bf16[4,8], index: 4, kind: input, shape index: {}]
  %s5 = inlined_call_operand.vmem [shape: f32[1,8], index: 5, kind: input, shape index: {}]
  %s6 = inlined_call_operand.vmem [shape: f32[2,8,8,8], index: 6, kind: output, shape index: {}]
  %s7 = sld [smem:[#allocation0]]
  $region57: #{basic_block_forward.3} parent=0
    _
  %s9 = ssub.s32 1, %s7
  %s10 = scalar_select 0, %s9, %s7
  loop: start=0, step=1, limit=4
  $region2: #{basic_block_forward.3} parent=0 // loop_pre_header
    _
  $region3: #{basic_block_forward.3} parent=0 // loop_header
    %s12 = sphi 0, %s16
    %p13 = scmp.ge.s32.totalorder %s12, 4
    %s22 = sphi 0, %s24
    %s25 = sphi 0, %s22
    %s26 = sphi 0, %s25
    %s42 = sphi 0, %s26
    %s46 = sphi 0, %s46
    %s48 = sphi 0, %s46
    %s49 = sphi 0, %s48
    %s63 = sphi 0, %s49
    %s67 = sphi 0, %s67
    %s69 = sphi 0, %s67
    %s70 = sphi 0, %s69
    %s84 = sphi 0, %s70
    %s90 = sphi 0, %s92
    %s93 = sphi 0, %s90
    %s94 = sphi 0, %s93
    %s110 = sphi 0, %s94
    %s114 = sphi 0, %s114
    %s116 = sphi 0, %s114
    %s117 = sphi 0, %s116
    %s131 = sphi 0, %s117
    %s135 = sphi 0, %s135
    %s137 = sphi 0, %s135
    %s138 = sphi 0, %s137
    %s152 = sphi 0, %s138
    %s158 = sphi 0, %s160
    %s161 = sphi 0, %s158
    %s162 = sphi 0, %s161
    %s178 = sphi 0, %s162
  $region4: #{basic_block_forward.3} parent=0 // loop_header_branch
    %15 = sbr.rel (%p13) target = $region8
  $region5: #{basic_block_forward.3} parent=0 // loop_body
    %s17 = ssub.s32 %s12, 1
    %s18 = ssub.s32 %s12, 2
    %s19 = sadd.s32 %s12, 1
    %s20 = ssub.s32 %s12, %s19
    %p21 = scmp.eq.s32.totalorder %s20, 0
    %s23 = sadd.s32 %s22, 1
    %s24 = scalar_select %p21, %s22, %s23
    %p27 = pneg %p21
    %p28 = scmp.eq.s32.totalorder %s12, 1
    %p29 = por %p27, %p28
    %p30 = scmp.ne.s32.totalorder %s22, %s25
    %p31 = scmp.eq.s32.totalorder %s12, 0
    %p32 = por %p30, %p31
    %p33 = scmp.ne.s32.totalorder %s22, %s25
    %p34 = scmp.eq.s32.totalorder %s17, 1
    %p35 = por %p33, %p34
    %p36 = scmp.ne.s32.totalorder %s25, %s26
    %p37 = scmp.eq.s32.totalorder %s17, 0
    %p38 = por %p36, %p37
    %p39 = scmp.ne.s32.totalorder %s25, %s26
    %p40 = scmp.eq.s32.totalorder %s18, 1
    %p41 = por %p39, %p40
    %p43 = scmp.ne.s32.totalorder %s26, %s42
    %p44 = scmp.eq.s32.totalorder %s18, 0
    %p45 = por %p43, %p44
    %s47 = sadd.s32 %s46, 1
    %p50 = scmp.eq.s32.totalorder %s12, 1
    %p51 = scmp.ne.s32.totalorder %s46, %s48
    %p52 = scmp.eq.s32.totalorder %s12, 0
    %p53 = por %p51, %p52
    %p54 = scmp.ne.s32.totalorder %s46, %s48
    %p55 = scmp.eq.s32.totalorder %s17, 1
    %p56 = por %p54, %p55
    %p57 = scmp.ne.s32.totalorder %s48, %s49
    %p58 = scmp.eq.s32.totalorder %s17, 0
    %p59 = por %p57, %p58
    %p60 = scmp.ne.s32.totalorder %s48, %s49
    %p61 = scmp.eq.s32.totalorder %s18, 1
    %p62 = por %p60, %p61
    %p64 = scmp.ne.s32.totalorder %s49, %s63
    %p65 = scmp.eq.s32.totalorder %s18, 0
    %p66 = por %p64, %p65
    %s68 = sadd.s32 %s67, 1
    %p71 = scmp.eq.s32.totalorder %s12, 1
    %p72 = scmp.ne.s32.totalorder %s67, %s69
    %p73 = scmp.eq.s32.totalorder %s12, 0
    %p74 = por %p72, %p73
    %p75 = scmp.ne.s32.totalorder %s67, %s69
    %p76 = scmp.eq.s32.totalorder %s17, 1
    %p77 = por %p75, %p76
    %p78 = scmp.ne.s32.totalorder %s69, %s70
    %p79 = scmp.eq.s32.totalorder %s17, 0
    %p80 = por %p78, %p79
    %p81 = scmp.ne.s32.totalorder %s69, %s70
    %p82 = scmp.eq.s32.totalorder %s18, 1
    %p83 = por %p81, %p82
    %p85 = scmp.ne.s32.totalorder %s70, %s84
    %p86 = scmp.eq.s32.totalorder %s18, 0
    %p87 = por %p85, %p86
    %s88 = ssub.s32 %s12, %s19
    %p89 = scmp.eq.s32.totalorder %s88, 0
    %s91 = sadd.s32 %s90, 1
    %s92 = scalar_select %p89, %s90, %s91
    %p95 = pneg %p89
    %p96 = scmp.eq.s32.totalorder %s12, 1
    %p97 = por %p95, %p96
    %p98 = scmp.ne.s32.totalorder %s90, %s93
    %p99 = scmp.eq.s32.totalorder %s12, 0
    %p100 = por %p98, %p99
    %p101 = scmp.ne.s32.totalorder %s90, %s93
    %p102 = scmp.eq.s32.totalorder %s17, 1
    %p103 = por %p101, %p102
    %p104 = scmp.ne.s32.totalorder %s93, %s94
    %p105 = scmp.eq.s32.totalorder %s17, 0
    %p106 = por %p104, %p105
    %p107 = scmp.ne.s32.totalorder %s93, %s94
    %p108 = scmp.eq.s32.totalorder %s18, 1
    %p109 = por %p107, %p108
    %p111 = scmp.ne.s32.totalorder %s94, %s110
    %p112 = scmp.eq.s32.totalorder %s18, 0
    %p113 = por %p111, %p112
    %s115 = sadd.s32 %s114, 1
    %p118 = scmp.eq.s32.totalorder %s12, 1
    %p119 = scmp.ne.s32.totalorder %s114, %s116
    %p120 = scmp.eq.s32.totalorder %s12, 0
    %p121 = por %p119, %p120
    %p122 = scmp.ne.s32.totalorder %s114, %s116
    %p123 = scmp.eq.s32.totalorder %s17, 1
    %p124 = por %p122, %p123
    %p125 = scmp.ne.s32.totalorder %s116, %s117
    %p126 = scmp.eq.s32.totalorder %s17, 0
    %p127 = por %p125, %p126
    %p128 = scmp.ne.s32.totalorder %s116, %s117
    %p129 = scmp.eq.s32.totalorder %s18, 1
    %p130 = por %p128, %p129
    %p132 = scmp.ne.s32.totalorder %s117, %s131
    %p133 = scmp.eq.s32.totalorder %s18, 0
    %p134 = por %p132, %p133
    %s136 = sadd.s32 %s135, 1
    %p139 = scmp.eq.s32.totalorder %s12, 1
    %p140 = scmp.ne.s32.totalorder %s135, %s137
    %p141 = scmp.eq.s32.totalorder %s12, 0
    %p142 = por %p140, %p141
    %p143 = scmp.ne.s32.totalorder %s135, %s137
    %p144 = scmp.eq.s32.totalorder %s17, 1
    %p145 = por %p143, %p144
    %p146 = scmp.ne.s32.totalorder %s137, %s138
    %p147 = scmp.eq.s32.totalorder %s17, 0
    %p148 = por %p146, %p147
    %p149 = scmp.ne.s32.totalorder %s137, %s138
    %p150 = scmp.eq.s32.totalorder %s18, 1
    %p151 = por %p149, %p150
    %p153 = scmp.ne.s32.totalorder %s138, %s152
    %p154 = scmp.eq.s32.totalorder %s18, 0
    %p155 = por %p153, %p154
    %s156 = ssub.s32 %s12, %s19
    %p157 = scmp.eq.s32.totalorder %s156, 0
    %s159 = sadd.s32 %s158, 1
    %s160 = scalar_select %p157, %s158, %s159
    %p163 = pneg %p157
    %p164 = scmp.eq.s32.totalorder %s12, 1
    %p165 = por %p163, %p164
    %p166 = scmp.ne.s32.totalorder %s158, %s161
    %p167 = scmp.eq.s32.totalorder %s12, 0
    %p168 = por %p166, %p167
    %p169 = scmp.ne.s32.totalorder %s158, %s161
    %p170 = scmp.eq.s32.totalorder %s17, 1
    %p171 = por %p169, %p170
    %p172 = scmp.ne.s32.totalorder %s161, %s162
    %p173 = scmp.eq.s32.totalorder %s17, 0
    %p174 = por %p172, %p173
    %p175 = scmp.ne.s32.totalorder %s161, %s162
    %p176 = scmp.eq.s32.totalorder %s18, 1
    %p177 = por %p175, %p176
    %p179 = scmp.ne.s32.totalorder %s162, %s178
    %p180 = scmp.eq.s32.totalorder %s18, 0
    %p181 = por %p179, %p180
    %p182 = scmp.le.s32.totalorder 1, %s12
    %p183 = scmp.lt.s32.totalorder %s12, 3
    %p184 = pnand %p182, %p183
    %p185 = pneg %p184
    // Predicated region
    $region9: #{basic_block_forward.3} parent=5 // pred_check
      _
    $region10: #{basic_block_forward.3} parent=5 // pred_check_branch
      %187 = sbr.rel (%p184) target = $region12
    $region11: #{basic_block_forward.3} parent=5 // pred_region
      %s188 = ssub.s32 %s12, 1
      // Predicated region
      $region13: #{basic_block_forward.3} parent=11 // pred_check
        %p189 = pneg %p59
      $region14: #{basic_block_forward.3} parent=11 // pred_check_branch
        %191 = sbr.rel (%p189) target = $region16
      $region15: #{basic_block_forward.3} parent=11 // pred_region
        _
      $region16: #{basic_block_forward.3} parent=11 // pred_fallthru
        _
      // Predicated region
      $region17: #{basic_block_forward.3} parent=11 // pred_check
        %p192 = pneg %p80
      $region18: #{basic_block_forward.3} parent=11 // pred_check_branch
        %194 = sbr.rel (%p192) target = $region20
      $region19: #{basic_block_forward.3} parent=11 // pred_region
        _
      $region20: #{basic_block_forward.3} parent=11 // pred_fallthru
        _
      // Predicated region
      $region21: #{basic_block_forward.3} parent=11 // pred_check
        %p195 = pneg %p127
      $region22: #{basic_block_forward.3} parent=11 // pred_check_branch
        %197 = sbr.rel (%p195) target = $region24
      $region23: #{basic_block_forward.3} parent=11 // pred_region
        _
      $region24: #{basic_block_forward.3} parent=11 // pred_fallthru
        _
      // Predicated region
      $region25: #{basic_block_forward.3} parent=11 // pred_check
        %p198 = pneg %p148
      $region26: #{basic_block_forward.3} parent=11 // pred_check_branch
        %200 = sbr.rel (%p198) target = $region28
      $region27: #{basic_block_forward.3} parent=11 // pred_region
        _
      $region28: #{basic_block_forward.3} parent=11 // pred_fallthru
        _
    $region12: #{basic_block_forward.3} parent=5 // pred_fallthru
      _
    %p201 = scmp.lt.s32.totalorder %s12, 2
    // Predicated region
    $region29: #{basic_block_forward.3} parent=5 // pred_check
      %p202 = pneg %p201
    $region30: #{basic_block_forward.3} parent=5 // pred_check_branch
      %204 = sbr.rel (%p202) target = $region32
    $region31: #{basic_block_forward.3} parent=5 // pred_region
      // Predicated region
      $region33: #{basic_block_forward.3} parent=31 // pred_check
        %p205 = pneg %p32
      $region34: #{basic_block_forward.3} parent=31 // pred_check_branch
        %207 = sbr.rel (%p205) target = $region36
      $region35: #{basic_block_forward.3} parent=31 // pred_region
        %p208 = scmp.lt.s32.totalorder %s12, 1
        %s209 = scalar_select %p208, %s12, 1
        %s210 = smul.addr %s209, 20
        %s211 = smul.addr %s210, 4
        %s212 = scalar_lea.vmem %s0, %s211
      $region36: #{basic_block_forward.3} parent=31 // pred_fallthru
        _
      // Predicated region
      $region37: #{basic_block_forward.3} parent=31 // pred_check
        %p213 = pneg %p100
      $region38: #{basic_block_forward.3} parent=31 // pred_check_branch
        %215 = sbr.rel (%p213) target = $region40
      $region39: #{basic_block_forward.3} parent=31 // pred_region
        %p216 = scmp.lt.s32.totalorder %s12, 1
        %s217 = scalar_select %p216, %s12, 1
        %s218 = smul.addr %s217, 8
        %s219 = smul.addr %s218, 4
        %s220 = scalar_lea.vmem %s3, %s219
      $region40: #{basic_block_forward.3} parent=31 // pred_fallthru
        _
    $region32: #{basic_block_forward.3} parent=5 // pred_fallthru
      _
    %p221 = scmp.le.s32.totalorder 1, %s12
    %p222 = scmp.lt.s32.totalorder %s12, 3
    %p223 = pnand %p221, %p222
    %p224 = pneg %p223
    // Predicated region
    $region41: #{basic_block_forward.3} parent=5 // pred_check
      _
    $region42: #{basic_block_forward.3} parent=5 // pred_check_branch
      %226 = sbr.rel (%p223) target = $region44
    $region43: #{basic_block_forward.3} parent=5 // pred_region
      %s227 = ssub.s32 %s12, 1
      %p228 = scmp.lt.s32.totalorder %s17, 1
      %s229 = scalar_select %p228, %s17, 1
      %s230 = smul.addr %s229, 20
      %s231 = smul.addr %s230, 4
      %s232 = scalar_lea.vmem %s0, %s231
      %p233 = pneg %p38
      %p234 = pneg %p35
      %p235 = pneg %p59
      %p236 = pneg %p56
      %p237 = pneg %p80
      %p238 = pneg %p77
      %p239 = scmp.lt.s32.totalorder %s17, 1
      %s240 = scalar_select %p239, %s17, 1
      %s241 = smul.addr %s240, 8
      %s242 = smul.addr %s241, 4
      %s243 = scalar_lea.vmem %s3, %s242
      %p244 = pneg %p106
      %p245 = pneg %p103
      %p246 = pneg %p127
      %p247 = pneg %p124
      %p248 = pneg %p148
      %p249 = pneg %p145
      %p250 = pneg %p174
      %p251 = pneg %p171
      %p252 = scmp.lt.s32.totalorder %s17, 1
      %s253 = scalar_select %p252, %s17, 1
      %s254 = smul.addr %s253, 8
      %s255 = smul.addr %s254, 8
      %s256 = scalar_lea.vmem %s6, %s255
      %p257 = scmp.lt.s32.totalorder %s17, 1
      %s258 = scalar_select %p257, %s17, 1
      %s259 = smul.addr %s258, 20
      %s260 = smul.addr %s259, 4
      %s261 = scalar_lea.vmem %s0, %s260
      %p262 = scmp.lt.s32.totalorder %s17, 1
      %s263 = scalar_select %p262, %s17, 1
      %s264 = smul.addr %s263, 8
      %s265 = smul.addr %s264, 4
      %s266 = scalar_lea.vmem %s3, %s265
      %p267 = scmp.lt.s32.totalorder %s17, 1
      %s268 = scalar_select %p267, %s17, 1
      %s269 = smul.addr %s268, 8
      %s270 = smul.addr %s269, 8
      %s271 = scalar_lea.vmem %s6, %s270
      %v273 = vld [vmem:[%s261] sm:$0xf]
      %v274 = vld [vmem:[%s261 + $0x8] sm:$0xf]
      %v275 = vld [vmem:[%s261 + $0x10] sm:$0xf]
      %v276 = vld [vmem:[%s261 + $0x18] sm:$0xf]
      %v277 = vld [vmem:[%s261 + $0x20] sm:$0xf]
      %v278 = vld [vmem:[%s261 + $0x28] sm:$0xf]
      %v279 = vld [vmem:[%s261 + $0x30] sm:$0xf]
      %v280 = vld [vmem:[%s261 + $0x38] sm:$0xf]
      %v281 = vld [vmem:[%s1] sm:$0xf]
      %v282 = vld [vmem:[%s261 + $0x4] sm:$0x1]
      %v283 = vld [vmem:[%s261 + $0xc] sm:$0x1]
      %v284 = vld [vmem:[%s261 + $0x14] sm:$0x1]
      %v285 = vld [vmem:[%s261 + $0x1c] sm:$0x1]
      %v286 = vld [vmem:[%s261 + $0x24] sm:$0x1]
      %v287 = vld [vmem:[%s261 + $0x2c] sm:$0x1]
      %v288 = vld [vmem:[%s261 + $0x34] sm:$0x1]
      %v289 = vld [vmem:[%s261 + $0x3c] sm:$0x1]
      %vm290 = vsmask.f32 3328
      %vm291 = vsmask.f32 7440
      %vm292 = vmor %vm290, %vm291
      %v294 = vshrl.u32 %v273, 16
      %v296 = vrot.slane %v294, 4
      %v297 = vshll.u32 %v273, 16
      %v299 = vrot.slane %v297, 5
      %v300 = vor.u32 %v296, %v299
      %v301 = vrot.slane %v300, 4
      %v303 = vshll.u32 %v282, 16
      %v305 = vrot.slane %v303, 5
      %v306 = vsel %vm292, %v301, %v305
      %v308 = vshrl.u32 %v274, 16
      %v310 = vrot.slane %v308, 4
      %v311 = vshll.u32 %v274, 16
      %v313 = vrot.slane %v311, 5
      %v314 = vor.u32 %v310, %v313
      %v315 = vrot.slane %v314, 4
      %v317 = vshll.u32 %v283, 16
      %v319 = vrot.slane %v317, 5
      %v320 = vsel %vm292, %v315, %v319
      %v322 = vshrl.u32 %v275, 16
      %v324 = vrot.slane %v322, 4
      %v325 = vshll.u32 %v275, 16
      %v327 = vrot.slane %v325, 5
      %v328 = vor.u32 %v324, %v327
      %v329 = vrot.slane %v328, 4
      %v331 = vshll.u32 %v284, 16
      %v333 = vrot.slane %v331, 5
      %v334 = vsel %vm292, %v329, %v333
      %v336 = vshrl.u32 %v276, 16
      %v338 = vrot.slane %v336, 4
      %v339 = vshll.u32 %v276, 16
      %v341 = vrot.slane %v339, 5
      %v342 = vor.u32 %v338, %v341
      %v343 = vrot.slane %v342, 4
      %v345 = vshll.u32 %v285, 16
      %v347 = vrot.slane %v345, 5
      %v348 = vsel %vm292, %v343, %v347
      %v350 = vshrl.u32 %v277, 16
      %v352 = vrot.slane %v350, 4
      %v353 = vshll.u32 %v277, 16
      %v355 = vrot.slane %v353, 5
      %v356 = vor.u32 %v352, %v355
      %v357 = vrot.slane %v356, 4
      %v359 = vshll.u32 %v286, 16
      %v361 = vrot.slane %v359, 5
      %v362 = vsel %vm292, %v357, %v361
      %v364 = vshrl.u32 %v278, 16
      %v366 = vrot.slane %v364, 4
      %v367 = vshll.u32 %v278, 16
      %v369 = vrot.slane %v367, 5
      %v370 = vor.u32 %v366, %v369
      %v371 = vrot.slane %v370, 4
      %v373 = vshll.u32 %v287, 16
      %v375 = vrot.slane %v373, 5
      %v376 = vsel %vm292, %v371, %v375
      %v378 = vshrl.u32 %v279, 16
      %v380 = vrot.slane %v378, 4
      %v381 = vshll.u32 %v279, 16
      %v383 = vrot.slane %v381, 5
      %v384 = vor.u32 %v380, %v383
      %v385 = vrot.slane %v384, 4
      %v387 = vshll.u32 %v288, 16
      %v389 = vrot.slane %v387, 5
      %v390 = vsel %vm292, %v385, %v389
      %v392 = vshrl.u32 %v280, 16
      %v394 = vrot.slane %v392, 4
      %v395 = vshll.u32 %v280, 16
      %v397 = vrot.slane %v395, 5
      %v398 = vor.u32 %v394, %v397
      %v399 = vrot.slane %v398, 4
      %v401 = vshll.u32 %v289, 16
      %v403 = vrot.slane %v401, 5
      %v404 = vsel %vm292, %v399, %v403
      %s405 = scalar_lea.vmem %s1, 4
      %v406 = vld [vmem:[%s405] sm:$0xf]
      %v407 = vunpack.c.l.b16 %v306
      %v408 = vunpack.c.l.b16 %v320
      %v409 = vunpack.c.l.b16 %v334
      %v410 = vunpack.c.l.b16 %v348
      %v411 = vunpack.c.l.b16 %v362
      %v412 = vunpack.c.l.b16 %v376
      %v413 = vunpack.c.l.b16 %v390
      %v414 = vunpack.c.l.b16 %v404
      %v415 = vpack.c.b16 %v408, %v407
      %v416 = vpack.c.b16 %v410, %v409
      %v417 = vpack.c.b16 %v412, %v411
      %v418 = vpack.c.b16 %v414, %v413
      %vm419 = vcmask 64512
      %v421 = vsel %vm419, %v415, 0
      %v424 = vsel %vm419, %v416, 0
      %v427 = vsel %vm419, %v417, 0
      %v430 = vsel %vm419, %v418, 0
      %vm432 = vcmask 1043456
      %v434 = vsel %vm432, %v406, 0
      %436 = vmatpush.bf16.msra.mxu0 0
      %437 = vmatpush.bf16.msra.mxu0 0
      %438 = vmatpush.bf16.msra.mxu0 0
      %439 = vmatpush.bf16.msra.mxu0 0
      %440 = vmatpush.bf16.msra.mxu0 0
      %441 = vmatpush.bf16.msra.mxu0 0
      %442 = vmatpush.bf16.msra.mxu0 0
      %443 = vmatpush.bf16.msra.mxu0 %v434
      %444 = vmatmul.bf16.gmra.mxu0 %v421
      %v445 = vpop.f32.mrf.mxu0
      %v446 = vadd.f32 0.0, %v445
      %v447 = vpop.f32.mrf.mxu0
      %v448 = vadd.f32 0.0, %v447
      %449 = vmatmul.bf16.gmra.mxu0 %v424
      %v450 = vpop.f32.mrf.mxu0
      %v451 = vadd.f32 0.0, %v450
      %v452 = vpop.f32.mrf.mxu0
      %v453 = vadd.f32 0.0, %v452
      %454 = vmatmul.bf16.gmra.mxu0 %v427
      %v455 = vpop.f32.mrf.mxu0
      %v456 = vadd.f32 0.0, %v455
      %v457 = vpop.f32.mrf.mxu0
      %v458 = vadd.f32 0.0, %v457
      %459 = vmatmul.bf16.gmra.mxu0 %v430
      %v460 = vpop.f32.mrf.mxu0
      %v461 = vadd.f32 0.0, %v460
      %v462 = vpop.f32.mrf.mxu0
      %v463 = vadd.f32 0.0, %v462
      %464 = vdwg.mxu0
      %v473 = vunpack.c.l.b16 %v273
      %v474 = vunpack.c.l.b16 %v274
      %v475 = vunpack.c.l.b16 %v275
      %v476 = vunpack.c.l.b16 %v276
      %v477 = vunpack.c.l.b16 %v277
      %v478 = vunpack.c.l.b16 %v278
      %v479 = vunpack.c.l.b16 %v279
      %v480 = vunpack.c.l.b16 %v280
      %v481 = vpack.c.b16 %v474, %v473
      %v482 = vpack.c.b16 %v476, %v475
      %v483 = vpack.c.b16 %v478, %v477
      %v484 = vpack.c.b16 %v480, %v479
      %v486 = vsel %vm419, %v481, 0
      %v489 = vsel %vm419, %v482, 0
      %v492 = vsel %vm419, %v483, 0
      %v495 = vsel %vm419, %v484, 0
      %v498 = vsel %vm432, %v281, 0
      %500 = vmatpush.bf16.msra.mxu0 0
      %501 = vmatpush.bf16.msra.mxu0 0
      %502 = vmatpush.bf16.msra.mxu0 0
      %503 = vmatpush.bf16.msra.mxu0 0
      %504 = vmatpush.bf16.msra.mxu0 0
      %505 = vmatpush.bf16.msra.mxu0 0
      %506 = vmatpush.bf16.msra.mxu0 0
      %507 = vmatpush.bf16.msra.mxu0 %v498
      %508 = vmatmul.bf16.gmra.mxu0 %v486
      %v509 = vpop.f32.mrf.mxu0
      %v510 = vadd.f32 %v446, %v509
      %v511 = vpop.f32.mrf.mxu0
      %v512 = vadd.f32 %v448, %v511
      %513 = vmatmul.bf16.gmra.mxu0 %v489
      %v514 = vpop.f32.mrf.mxu0
      %v515 = vadd.f32 %v451, %v514
      %v516 = vpop.f32.mrf.mxu0
      %v517 = vadd.f32 %v453, %v516
      %518 = vmatmul.bf16.gmra.mxu0 %v492
      %v519 = vpop.f32.mrf.mxu0
      %v520 = vadd.f32 %v456, %v519
      %v521 = vpop.f32.mrf.mxu0
      %v522 = vadd.f32 %v458, %v521
      %523 = vmatmul.bf16.gmra.mxu0 %v495
      %v524 = vpop.f32.mrf.mxu0
      %v525 = vadd.f32 %v461, %v524
      %v526 = vpop.f32.mrf.mxu0
      %v527 = vadd.f32 %v463, %v526
      %528 = vdwg.mxu0
      %v529 = vld [vmem:[%s261] sm:$0xe]
      %v530 = vld [vmem:[%s261 + $0x8] sm:$0xe]
      %v531 = vld [vmem:[%s261 + $0x10] sm:$0xe]
      %v532 = vld [vmem:[%s261 + $0x18] sm:$0xe]
      %v533 = vld [vmem:[%s261 + $0x20] sm:$0xe]
      %v534 = vld [vmem:[%s261 + $0x28] sm:$0xe]
      %v535 = vld [vmem:[%s261 + $0x30] sm:$0xe]
      %v536 = vld [vmem:[%s261 + $0x38] sm:$0xe]
      %vm553 = vcmask 1042432
      %vm554 = vcmask 1046532
      %vm555 = vmor %vm553, %vm554
      %v556 = vrot.slane %v529, 5
      %v557 = vrot.slane %v556, 4
      %v558 = vrot.slane %v282, 5
      %v559 = vsel %vm555, %v557, %v558
      %v560 = vrot.slane %v530, 5
      %v561 = vrot.slane %v560, 4
      %v562 = vrot.slane %v283, 5
      %v563 = vsel %vm555, %v561, %v562
      %v564 = vrot.slane %v531, 5
      %v565 = vrot.slane %v564, 4
      %v566 = vrot.slane %v284, 5
      %v567 = vsel %vm555, %v565, %v566
      %v568 = vrot.slane %v532, 5
      %v569 = vrot.slane %v568, 4
      %v570 = vrot.slane %v285, 5
      %v571 = vsel %vm555, %v569, %v570
      %v572 = vrot.slane %v533, 5
      %v573 = vrot.slane %v572, 4
      %v574 = vrot.slane %v286, 5
      %v575 = vsel %vm555, %v573, %v574
      %v576 = vrot.slane %v534, 5
      %v577 = vrot.slane %v576, 4
      %v578 = vrot.slane %v287, 5
      %v579 = vsel %vm555, %v577, %v578
      %v580 = vrot.slane %v535, 5
      %v581 = vrot.slane %v580, 4
      %v582 = vrot.slane %v288, 5
      %v583 = vsel %vm555, %v581, %v582
      %v584 = vrot.slane %v536, 5
      %v585 = vrot.slane %v584, 4
      %v586 = vrot.slane %v289, 5
      %v587 = vsel %vm555, %v585, %v586
      %s588 = scalar_lea.vmem %s1, 8
      %v589 = vld [vmem:[%s588] sm:$0xf]
      %v590 = vunpack.c.l.b16 %v559
      %v591 = vunpack.c.l.b16 %v563
      %v592 = vunpack.c.l.b16 %v567
      %v593 = vunpack.c.l.b16 %v571
      %v594 = vunpack.c.l.b16 %v575
      %v595 = vunpack.c.l.b16 %v579
      %v596 = vunpack.c.l.b16 %v583
      %v597 = vunpack.c.l.b16 %v587
      %v598 = vpack.c.b16 %v591, %v590
      %v599 = vpack.c.b16 %v593, %v592
      %v600 = vpack.c.b16 %v595, %v594
      %v601 = vpack.c.b16 %v597, %v596
      %v603 = vsel %vm419, %v598, 0
      %v606 = vsel %vm419, %v599, 0
      %v609 = vsel %vm419, %v600, 0
      %v612 = vsel %vm419, %v601, 0
      %v615 = vsel %vm432, %v589, 0
      %617 = vmatpush.bf16.msra.mxu0 0
      %618 = vmatpush.bf16.msra.mxu0 0
      %619 = vmatpush.bf16.msra.mxu0 0
      %620 = vmatpush.bf16.msra.mxu0 0
      %621 = vmatpush.bf16.msra.mxu0 0
      %622 = vmatpush.bf16.msra.mxu0 0
      %623 = vmatpush.bf16.msra.mxu0 0
      %624 = vmatpush.bf16.msra.mxu0 %v615
      %625 = vmatmul.bf16.gmra.mxu0 %v603
      %v626 = vpop.f32.mrf.mxu0
      %v627 = vadd.f32 0.0, %v626
      %v628 = vpop.f32.mrf.mxu0
      %v629 = vadd.f32 0.0, %v628
      %630 = vmatmul.bf16.gmra.mxu0 %v606
      %v631 = vpop.f32.mrf.mxu0
      %v632 = vadd.f32 0.0, %v631
      %v633 = vpop.f32.mrf.mxu0
      %v634 = vadd.f32 0.0, %v633
      %635 = vmatmul.bf16.gmra.mxu0 %v609
      %v636 = vpop.f32.mrf.mxu0
      %v637 = vadd.f32 0.0, %v636
      %v638 = vpop.f32.mrf.mxu0
      %v639 = vadd.f32 0.0, %v638
      %640 = vmatmul.bf16.gmra.mxu0 %v612
      %v641 = vpop.f32.mrf.mxu0
      %v642 = vadd.f32 0.0, %v641
      %v643 = vpop.f32.mrf.mxu0
      %v644 = vadd.f32 0.0, %v643
      %645 = vdwg.mxu0
      %v646 = vadd.f32 %v510, %v627
      %v647 = vadd.f32 %v512, %v629
      %v648 = vadd.f32 %v515, %v632
      %v649 = vadd.f32 %v517, %v634
      %v650 = vadd.f32 %v520, %v637
      %v651 = vadd.f32 %v522, %v639
      %v652 = vadd.f32 %v525, %v642
      %v653 = vadd.f32 %v527, %v644
      %s654 = scalar_lea.vmem %s261, 8
      %v655 = vld [vmem:[%s654] sm:$0xf]
      %v656 = vld [vmem:[%s654 + $0x8] sm:$0xf]
      %v657 = vld [vmem:[%s654 + $0x10] sm:$0xf]
      %v658 = vld [vmem:[%s654 + $0x18] sm:$0xf]
      %v659 = vld [vmem:[%s654 + $0x20] sm:$0xf]
      %v660 = vld [vmem:[%s654 + $0x28] sm:$0xf]
      %v661 = vld [vmem:[%s654 + $0x30] sm:$0xf]
      %v662 = vld [vmem:[%s654 + $0x38] sm:$0xf]
      %s663 = scalar_lea.vmem %s1, 12
      %v664 = vld [vmem:[%s663] sm:$0xf]
      %v673 = vunpack.c.l.b16 %v655
      %v674 = vunpack.c.l.b16 %v656
      %v675 = vunpack.c.l.b16 %v657
      %v676 = vunpack.c.l.b16 %v658
      %v677 = vunpack.c.l.b16 %v659
      %v678 = vunpack.c.l.b16 %v660
      %v679 = vunpack.c.l.b16 %v661
      %v680 = vunpack.c.l.b16 %v662
      %v681 = vpack.c.b16 %v674, %v673
      %v682 = vpack.c.b16 %v676, %v675
      %v683 = vpack.c.b16 %v678, %v677
      %v684 = vpack.c.b16 %v680, %v679
      %v686 = vsel %vm419, %v681, 0
      %v689 = vsel %vm419, %v682, 0
      %v692 = vsel %vm419, %v683, 0
      %v695 = vsel %vm419, %v684, 0
      %v698 = vsel %vm432, %v664, 0
      %700 = vmatpush.bf16.msra.mxu0 0
      %701 = vmatpush.bf16.msra.mxu0 0
      %702 = vmatpush.bf16.msra.mxu0 0
      %703 = vmatpush.bf16.msra.mxu0 0
      %704 = vmatpush.bf16.msra.mxu0 0
      %705 = vmatpush.bf16.msra.mxu0 0
      %706 = vmatpush.bf16.msra.mxu0 0
      %707 = vmatpush.bf16.msra.mxu0 %v698
      %708 = vmatmul.bf16.gmra.mxu0 %v686
      %v709 = vpop.f32.mrf.mxu0
      %v710 = vadd.f32 0.0, %v709
      %v711 = vpop.f32.mrf.mxu0
      %v712 = vadd.f32 0.0, %v711
      %713 = vmatmul.bf16.gmra.mxu0 %v689
      %v714 = vpop.f32.mrf.mxu0
      %v715 = vadd.f32 0.0, %v714
      %v716 = vpop.f32.mrf.mxu0
      %v717 = vadd.f32 0.0, %v716
      %718 = vmatmul.bf16.gmra.mxu0 %v692
      %v719 = vpop.f32.mrf.mxu0
      %v720 = vadd.f32 0.0, %v719
      %v721 = vpop.f32.mrf.mxu0
      %v722 = vadd.f32 0.0, %v721
      %723 = vmatmul.bf16.gmra.mxu0 %v695
      %v724 = vpop.f32.mrf.mxu0
      %v725 = vadd.f32 0.0, %v724
      %v726 = vpop.f32.mrf.mxu0
      %v727 = vadd.f32 0.0, %v726
      %728 = vdwg.mxu0
      %v729 = vadd.f32 %v646, %v710
      %v730 = vadd.f32 %v647, %v712
      %v731 = vadd.f32 %v648, %v715
      %v732 = vadd.f32 %v649, %v717
      %v733 = vadd.f32 %v650, %v720
      %v734 = vadd.f32 %v651, %v722
      %v735 = vadd.f32 %v652, %v725
      %v736 = vadd.f32 %v653, %v727
      %v737 = vld [vmem:[%s654] sm:$0xf]
      %v738 = vld [vmem:[%s654 + $0x4] sm:$0x1]
      %v739 = vld [vmem:[%s654 + $0x8] sm:$0xf]
      %v740 = vld [vmem:[%s654 + $0xc] sm:$0x1]
      %v741 = vld [vmem:[%s654 + $0x10] sm:$0xf]
      %v742 = vld [vmem:[%s654 + $0x14] sm:$0x1]
      %v743 = vld [vmem:[%s654 + $0x18] sm:$0xf]
      %v744 = vld [vmem:[%s654 + $0x1c] sm:$0x1]
      %v745 = vld [vmem:[%s654 + $0x20] sm:$0xf]
      %v746 = vld [vmem:[%s654 + $0x24] sm:$0x1]
      %v747 = vld [vmem:[%s654 + $0x28] sm:$0xf]
      %v748 = vld [vmem:[%s654 + $0x2c] sm:$0x1]
      %v749 = vld [vmem:[%s654 + $0x30] sm:$0xf]
      %v750 = vld [vmem:[%s654 + $0x34] sm:$0x1]
      %v751 = vld [vmem:[%s654 + $0x38] sm:$0xf]
      %v752 = vld [vmem:[%s654 + $0x3c] sm:$0x1]
      %v754 = vshrl.u32 %v737, 16
      %v756 = vrot.slane %v754, 4
      %v757 = vshll.u32 %v737, 16
      %v759 = vrot.slane %v757, 5
      %v760 = vor.u32 %v756, %v759
      %v761 = vrot.slane %v760, 4
      %v763 = vshll.u32 %v738, 16
      %v765 = vrot.slane %v763, 5
      %v766 = vsel %vm292, %v761, %v765
      %v768 = vshrl.u32 %v739, 16
      %v770 = vrot.slane %v768, 4
      %v771 = vshll.u32 %v739, 16
      %v773 = vrot.slane %v771, 5
      %v774 = vor.u32 %v770, %v773
      %v775 = vrot.slane %v774, 4
      %v777 = vshll.u32 %v740, 16
      %v779 = vrot.slane %v777, 5
      %v780 = vsel %vm292, %v775, %v779
      %v782 = vshrl.u32 %v741, 16
      %v784 = vrot.slane %v782, 4
      %v785 = vshll.u32 %v741, 16
      %v787 = vrot.slane %v785, 5
      %v788 = vor.u32 %v784, %v787
      %v789 = vrot.slane %v788, 4
      %v791 = vshll.u32 %v742, 16
      %v793 = vrot.slane %v791, 5
      %v794 = vsel %vm292, %v789, %v793
      %v796 = vshrl.u32 %v743, 16
      %v798 = vrot.slane %v796, 4
      %v799 = vshll.u32 %v743, 16
      %v801 = vrot.slane %v799, 5
      %v802 = vor.u32 %v798, %v801
      %v803 = vrot.slane %v802, 4
      %v805 = vshll.u32 %v744, 16
      %v807 = vrot.slane %v805, 5
      %v808 = vsel %vm292, %v803, %v807
      %v810 = vshrl.u32 %v745, 16
      %v812 = vrot.slane %v810, 4
      %v813 = vshll.u32 %v745, 16
      %v815 = vrot.slane %v813, 5
      %v816 = vor.u32 %v812, %v815
      %v817 = vrot.slane %v816, 4
      %v819 = vshll.u32 %v746, 16
      %v821 = vrot.slane %v819, 5
      %v822 = vsel %vm292, %v817, %v821
      %v824 = vshrl.u32 %v747, 16
      %v826 = vrot.slane %v824, 4
      %v827 = vshll.u32 %v747, 16
      %v829 = vrot.slane %v827, 5
      %v830 = vor.u32 %v826, %v829
      %v831 = vrot.slane %v830, 4
      %v833 = vshll.u32 %v748, 16
      %v835 = vrot.slane %v833, 5
      %v836 = vsel %vm292, %v831, %v835
      %v838 = vshrl.u32 %v749, 16
      %v840 = vrot.slane %v838, 4
      %v841 = vshll.u32 %v749, 16
      %v843 = vrot.slane %v841, 5
      %v844 = vor.u32 %v840, %v843
      %v845 = vrot.slane %v844, 4
      %v847 = vshll.u32 %v750, 16
      %v849 = vrot.slane %v847, 5
      %v850 = vsel %vm292, %v845, %v849
      %v852 = vshrl.u32 %v751, 16
      %v854 = vrot.slane %v852, 4
      %v855 = vshll.u32 %v751, 16
      %v857 = vrot.slane %v855, 5
      %v858 = vor.u32 %v854, %v857
      %v859 = vrot.slane %v858, 4
      %v861 = vshll.u32 %v752, 16
      %v863 = vrot.slane %v861, 5
      %v864 = vsel %vm292, %v859, %v863
      %s865 = scalar_lea.vmem %s1, 16
      %v866 = vld [vmem:[%s865] sm:$0xf]
      %v867 = vunpack.c.l.b16 %v766
      %v868 = vunpack.c.l.b16 %v780
      %v869 = vunpack.c.l.b16 %v794
      %v870 = vunpack.c.l.b16 %v808
      %v871 = vunpack.c.l.b16 %v822
      %v872 = vunpack.c.l.b16 %v836
      %v873 = vunpack.c.l.b16 %v850
      %v874 = vunpack.c.l.b16 %v864
      %v875 = vpack.c.b16 %v868, %v867
      %v876 = vpack.c.b16 %v870, %v869
      %v877 = vpack.c.b16 %v872, %v871
      %v878 = vpack.c.b16 %v874, %v873
      %v880 = vsel %vm419, %v875, 0
      %v883 = vsel %vm419, %v876, 0
      %v886 = vsel %vm419, %v877, 0
      %v889 = vsel %vm419, %v878, 0
      %v892 = vsel %vm432, %v866, 0
      %894 = vmatpush.bf16.msra.mxu0 0
      %895 = vmatpush.bf16.msra.mxu0 0
      %896 = vmatpush.bf16.msra.mxu0 0
      %897 = vmatpush.bf16.msra.mxu0 0
      %898 = vmatpush.bf16.msra.mxu0 0
      %899 = vmatpush.bf16.msra.mxu0 0
      %900 = vmatpush.bf16.msra.mxu0 0
      %901 = vmatpush.bf16.msra.mxu0 %v892
      %902 = vmatmul.bf16.gmra.mxu0 %v880
      %v903 = vpop.f32.mrf.mxu0
      %v904 = vadd.f32 0.0, %v903
      %v905 = vpop.f32.mrf.mxu0
      %v906 = vadd.f32 0.0, %v905
      %907 = vmatmul.bf16.gmra.mxu0 %v883
      %v908 = vpop.f32.mrf.mxu0
      %v909 = vadd.f32 0.0, %v908
      %v910 = vpop.f32.mrf.mxu0
      %v911 = vadd.f32 0.0, %v910
      %912 = vmatmul.bf16.gmra.mxu0 %v886
      %v913 = vpop.f32.mrf.mxu0
      %v914 = vadd.f32 0.0, %v913
      %v915 = vpop.f32.mrf.mxu0
      %v916 = vadd.f32 0.0, %v915
      %917 = vmatmul.bf16.gmra.mxu0 %v889
      %v918 = vpop.f32.mrf.mxu0
      %v919 = vadd.f32 0.0, %v918
      %v920 = vpop.f32.mrf.mxu0
      %v921 = vadd.f32 0.0, %v920
      %922 = vdwg.mxu0
      %v923 = vadd.f32 %v729, %v904
      %v924 = vadd.f32 %v730, %v906
      %v925 = vadd.f32 %v731, %v909
      %v926 = vadd.f32 %v732, %v911
      %v927 = vadd.f32 %v733, %v914
      %v928 = vadd.f32 %v734, %v916
      %v929 = vadd.f32 %v735, %v919
      %v930 = vadd.f32 %v736, %v921
      %v931 = vld [vmem:[%s654] sm:$0xe]
      %v932 = vld [vmem:[%s654 + $0x8] sm:$0xe]
      %v933 = vld [vmem:[%s654 + $0x10] sm:$0xe]
      %v934 = vld [vmem:[%s654 + $0x18] sm:$0xe]
      %v935 = vld [vmem:[%s654 + $0x20] sm:$0xe]
      %v936 = vld [vmem:[%s654 + $0x28] sm:$0xe]
      %v937 = vld [vmem:[%s654 + $0x30] sm:$0xe]
      %v938 = vld [vmem:[%s654 + $0x38] sm:$0xe]
      %v955 = vrot.slane %v931, 5
      %v956 = vrot.slane %v955, 4
      %v957 = vrot.slane %v738, 5
      %v958 = vsel %vm555, %v956, %v957
      %v959 = vrot.slane %v932, 5
      %v960 = vrot.slane %v959, 4
      %v961 = vrot.slane %v740, 5
      %v962 = vsel %vm555, %v960, %v961
      %v963 = vrot.slane %v933, 5
      %v964 = vrot.slane %v963, 4
      %v965 = vrot.slane %v742, 5
      %v966 = vsel %vm555, %v964, %v965
      %v967 = vrot.slane %v934, 5
      %v968 = vrot.slane %v967, 4
      %v969 = vrot.slane %v744, 5
      %v970 = vsel %vm555, %v968, %v969
      %v971 = vrot.slane %v935, 5
      %v972 = vrot.slane %v971, 4
      %v973 = vrot.slane %v746, 5
      %v974 = vsel %vm555, %v972, %v973
      %v975 = vrot.slane %v936, 5
      %v976 = vrot.slane %v975, 4
      %v977 = vrot.slane %v748, 5
      %v978 = vsel %vm555, %v976, %v977
      %v979 = vrot.slane %v937, 5
      %v980 = vrot.slane %v979, 4
      %v981 = vrot.slane %v750, 5
      %v982 = vsel %vm555, %v980, %v981
      %v983 = vrot.slane %v938, 5
      %v984 = vrot.slane %v983, 4
      %v985 = vrot.slane %v752, 5
      %v986 = vsel %vm555, %v984, %v985
      %s987 = scalar_lea.vmem %s1, 20
      %v988 = vld [vmem:[%s987] sm:$0xf]
      %v989 = vunpack.c.l.b16 %v958
      %v990 = vunpack.c.l.b16 %v962
      %v991 = vunpack.c.l.b16 %v966
      %v992 = vunpack.c.l.b16 %v970
      %v993 = vunpack.c.l.b16 %v974
      %v994 = vunpack.c.l.b16 %v978
      %v995 = vunpack.c.l.b16 %v982
      %v996 = vunpack.c.l.b16 %v986
      %v997 = vpack.c.b16 %v990, %v989
      %v998 = vpack.c.b16 %v992, %v991
      %v999 = vpack.c.b16 %v994, %v993
      %v1000 = vpack.c.b16 %v996, %v995
      %v1002 = vsel %vm419, %v997, 0
      %v1005 = vsel %vm419, %v998, 0
      %v1008 = vsel %vm419, %v999, 0
      %v1011 = vsel %vm419, %v1000, 0
      %v1014 = vsel %vm432, %v988, 0
      %1016 = vmatpush.bf16.msra.mxu0 0
      %1017 = vmatpush.bf16.msra.mxu0 0
      %1018 = vmatpush.bf16.msra.mxu0 0
      %1019 = vmatpush.bf16.msra.mxu0 0
      %1020 = vmatpush.bf16.msra.mxu0 0
      %1021 = vmatpush.bf16.msra.mxu0 0
      %1022 = vmatpush.bf16.msra.mxu0 0
      %1023 = vmatpush.bf16.msra.mxu0 %v1014
      %1024 = vmatmul.bf16.gmra.mxu0 %v1002
      %v1025 = vpop.f32.mrf.mxu0
      %v1026 = vadd.f32 0.0, %v1025
      %v1027 = vpop.f32.mrf.mxu0
      %v1028 = vadd.f32 0.0, %v1027
      %1029 = vmatmul.bf16.gmra.mxu0 %v1005
      %v1030 = vpop.f32.mrf.mxu0
      %v1031 = vadd.f32 0.0, %v1030
      %v1032 = vpop.f32.mrf.mxu0
      %v1033 = vadd.f32 0.0, %v1032
      %1034 = vmatmul.bf16.gmra.mxu0 %v1008
      %v1035 = vpop.f32.mrf.mxu0
      %v1036 = vadd.f32 0.0, %v1035
      %v1037 = vpop.f32.mrf.mxu0
      %v1038 = vadd.f32 0.0, %v1037
      %1039 = vmatmul.bf16.gmra.mxu0 %v1011
      %v1040 = vpop.f32.mrf.mxu0
      %v1041 = vadd.f32 0.0, %v1040
      %v1042 = vpop.f32.mrf.mxu0
      %v1043 = vadd.f32 0.0, %v1042
      %1044 = vdwg.mxu0
      %v1045 = vadd.f32 %v923, %v1026
      %v1046 = vadd.f32 %v924, %v1028
      %v1047 = vadd.f32 %v925, %v1031
      %v1048 = vadd.f32 %v926, %v1033
      %v1049 = vadd.f32 %v927, %v1036
      %v1050 = vadd.f32 %v928, %v1038
      %v1051 = vadd.f32 %v929, %v1041
      %v1052 = vadd.f32 %v930, %v1043
      %s1053 = scalar_lea.vmem %s261, 16
      %v1054 = vld [vmem:[%s1053] sm:$0xf]
      %v1055 = vld [vmem:[%s1053 + $0x8] sm:$0xf]
      %v1056 = vld [vmem:[%s1053 + $0x10] sm:$0xf]
      %v1057 = vld [vmem:[%s1053 + $0x18] sm:$0xf]
      %v1058 = vld [vmem:[%s1053 + $0x20] sm:$0xf]
      %v1059 = vld [vmem:[%s1053 + $0x28] sm:$0xf]
      %v1060 = vld [vmem:[%s1053 + $0x30] sm:$0xf]
      %v1061 = vld [vmem:[%s1053 + $0x38] sm:$0xf]
      %s1062 = scalar_lea.vmem %s1, 24
      %v1063 = vld [vmem:[%s1062] sm:$0xf]
      %v1072 = vunpack.c.l.b16 %v1054
      %v1073 = vunpack.c.l.b16 %v1055
      %v1074 = vunpack.c.l.b16 %v1056
      %v1075 = vunpack.c.l.b16 %v1057
      %v1076 = vunpack.c.l.b16 %v1058
      %v1077 = vunpack.c.l.b16 %v1059
      %v1078 = vunpack.c.l.b16 %v1060
      %v1079 = vunpack.c.l.b16 %v1061
      %v1080 = vpack.c.b16 %v1073, %v1072
      %v1081 = vpack.c.b16 %v1075, %v1074
      %v1082 = vpack.c.b16 %v1077, %v1076
      %v1083 = vpack.c.b16 %v1079, %v1078
      %v1085 = vsel %vm419, %v1080, 0
      %v1088 = vsel %vm419, %v1081, 0
      %v1091 = vsel %vm419, %v1082, 0
      %v1094 = vsel %vm419, %v1083, 0
      %v1097 = vsel %vm432, %v1063, 0
      %1099 = vmatpush.bf16.msra.mxu0 0
      %1100 = vmatpush.bf16.msra.mxu0 0
      %1101 = vmatpush.bf16.msra.mxu0 0
      %1102 = vmatpush.bf16.msra.mxu0 0
      %1103 = vmatpush.bf16.msra.mxu0 0
      %1104 = vmatpush.bf16.msra.mxu0 0
      %1105 = vmatpush.bf16.msra.mxu0 0
      %1106 = vmatpush.bf16.msra.mxu0 %v1097
      %1107 = vmatmul.bf16.gmra.mxu0 %v1085
      %v1108 = vpop.f32.mrf.mxu0
      %v1109 = vadd.f32 0.0, %v1108
      %v1110 = vpop.f32.mrf.mxu0
      %v1111 = vadd.f32 0.0, %v1110
      %1112 = vmatmul.bf16.gmra.mxu0 %v1088
      %v1113 = vpop.f32.mrf.mxu0
      %v1114 = vadd.f32 0.0, %v1113
      %v1115 = vpop.f32.mrf.mxu0
      %v1116 = vadd.f32 0.0, %v1115
      %1117 = vmatmul.bf16.gmra.mxu0 %v1091
      %v1118 = vpop.f32.mrf.mxu0
      %v1119 = vadd.f32 0.0, %v1118
      %v1120 = vpop.f32.mrf.mxu0
      %v1121 = vadd.f32 0.0, %v1120
      %1122 = vmatmul.bf16.gmra.mxu0 %v1094
      %v1123 = vpop.f32.mrf.mxu0
      %v1124 = vadd.f32 0.0, %v1123
      %v1125 = vpop.f32.mrf.mxu0
      %v1126 = vadd.f32 0.0, %v1125
      %1127 = vdwg.mxu0
      %v1128 = vadd.f32 %v1045, %v1109
      %v1129 = vadd.f32 %v1046, %v1111
      %v1130 = vadd.f32 %v1047, %v1114
      %v1131 = vadd.f32 %v1048, %v1116
      %v1132 = vadd.f32 %v1049, %v1119
      %v1133 = vadd.f32 %v1050, %v1121
      %v1134 = vadd.f32 %v1051, %v1124
      %v1135 = vadd.f32 %v1052, %v1126
      %v1136 = vld [vmem:[%s1053] sm:$0xf]
      %v1137 = vld [vmem:[%s1053 + $0x4] sm:$0x1]
      %v1138 = vld [vmem:[%s1053 + $0x8] sm:$0xf]
      %v1139 = vld [vmem:[%s1053 + $0xc] sm:$0x1]
      %v1140 = vld [vmem:[%s1053 + $0x10] sm:$0xf]
      %v1141 = vld [vmem:[%s1053 + $0x14] sm:$0x1]
      %v1142 = vld [vmem:[%s1053 + $0x18] sm:$0xf]
      %v1143 = vld [vmem:[%s1053 + $0x1c] sm:$0x1]
      %v1144 = vld [vmem:[%s1053 + $0x20] sm:$0xf]
      %v1145 = vld [vmem:[%s1053 + $0x24] sm:$0x1]
      %v1146 = vld [vmem:[%s1053 + $0x28] sm:$0xf]
      %v1147 = vld [vmem:[%s1053 + $0x2c] sm:$0x1]
      %v1148 = vld [vmem:[%s1053 + $0x30] sm:$0xf]
      %v1149 = vld [vmem:[%s1053 + $0x34] sm:$0x1]
      %v1150 = vld [vmem:[%s1053 + $0x38] sm:$0xf]
      %v1151 = vld [vmem:[%s1053 + $0x3c] sm:$0x1]
      %v1153 = vshrl.u32 %v1136, 16
      %v1155 = vrot.slane %v1153, 4
      %v1156 = vshll.u32 %v1136, 16
      %v1158 = vrot.slane %v1156, 5
      %v1159 = vor.u32 %v1155, %v1158
      %v1160 = vrot.slane %v1159, 4
      %v1162 = vshll.u32 %v1137, 16
      %v1164 = vrot.slane %v1162, 5
      %v1165 = vsel %vm292, %v1160, %v1164
      %v1167 = vshrl.u32 %v1138, 16
      %v1169 = vrot.slane %v1167, 4
      %v1170 = vshll.u32 %v1138, 16
      %v1172 = vrot.slane %v1170, 5
      %v1173 = vor.u32 %v1169, %v1172
      %v1174 = vrot.slane %v1173, 4
      %v1176 = vshll.u32 %v1139, 16
      %v1178 = vrot.slane %v1176, 5
      %v1179 = vsel %vm292, %v1174, %v1178
      %v1181 = vshrl.u32 %v1140, 16
      %v1183 = vrot.slane %v1181, 4
      %v1184 = vshll.u32 %v1140, 16
      %v1186 = vrot.slane %v1184, 5
      %v1187 = vor.u32 %v1183, %v1186
      %v1188 = vrot.slane %v1187, 4
      %v1190 = vshll.u32 %v1141, 16
      %v1192 = vrot.slane %v1190, 5
      %v1193 = vsel %vm292, %v1188, %v1192
      %v1195 = vshrl.u32 %v1142, 16
      %v1197 = vrot.slane %v1195, 4
      %v1198 = vshll.u32 %v1142, 16
      %v1200 = vrot.slane %v1198, 5
      %v1201 = vor.u32 %v1197, %v1200
      %v1202 = vrot.slane %v1201, 4
      %v1204 = vshll.u32 %v1143, 16
      %v1206 = vrot.slane %v1204, 5
      %v1207 = vsel %vm292, %v1202, %v1206
      %v1209 = vshrl.u32 %v1144, 16
      %v1211 = vrot.slane %v1209, 4
      %v1212 = vshll.u32 %v1144, 16
      %v1214 = vrot.slane %v1212, 5
      %v1215 = vor.u32 %v1211, %v1214
      %v1216 = vrot.slane %v1215, 4
      %v1218 = vshll.u32 %v1145, 16
      %v1220 = vrot.slane %v1218, 5
      %v1221 = vsel %vm292, %v1216, %v1220
      %v1223 = vshrl.u32 %v1146, 16
      %v1225 = vrot.slane %v1223, 4
      %v1226 = vshll.u32 %v1146, 16
      %v1228 = vrot.slane %v1226, 5
      %v1229 = vor.u32 %v1225, %v1228
      %v1230 = vrot.slane %v1229, 4
      %v1232 = vshll.u32 %v1147, 16
      %v1234 = vrot.slane %v1232, 5
      %v1235 = vsel %vm292, %v1230, %v1234
      %v1237 = vshrl.u32 %v1148, 16
      %v1239 = vrot.slane %v1237, 4
      %v1240 = vshll.u32 %v1148, 16
      %v1242 = vrot.slane %v1240, 5
      %v1243 = vor.u32 %v1239, %v1242
      %v1244 = vrot.slane %v1243, 4
      %v1246 = vshll.u32 %v1149, 16
      %v1248 = vrot.slane %v1246, 5
      %v1249 = vsel %vm292, %v1244, %v1248
      %v1251 = vshrl.u32 %v1150, 16
      %v1253 = vrot.slane %v1251, 4
      %v1254 = vshll.u32 %v1150, 16
      %v1256 = vrot.slane %v1254, 5
      %v1257 = vor.u32 %v1253, %v1256
      %v1258 = vrot.slane %v1257, 4
      %v1260 = vshll.u32 %v1151, 16
      %v1262 = vrot.slane %v1260, 5
      %v1263 = vsel %vm292, %v1258, %v1262
      %s1264 = scalar_lea.vmem %s1, 28
      %v1265 = vld [vmem:[%s1264] sm:$0xf]
      %v1266 = vunpack.c.l.b16 %v1165
      %v1267 = vunpack.c.l.b16 %v1179
      %v1268 = vunpack.c.l.b16 %v1193
      %v1269 = vunpack.c.l.b16 %v1207
      %v1270 = vunpack.c.l.b16 %v1221
      %v1271 = vunpack.c.l.b16 %v1235
      %v1272 = vunpack.c.l.b16 %v1249
      %v1273 = vunpack.c.l.b16 %v1263
      %v1274 = vpack.c.b16 %v1267, %v1266
      %v1275 = vpack.c.b16 %v1269, %v1268
      %v1276 = vpack.c.b16 %v1271, %v1270
      %v1277 = vpack.c.b16 %v1273, %v1272
      %v1279 = vsel %vm419, %v1274, 0
      %v1282 = vsel %vm419, %v1275, 0
      %v1285 = vsel %vm419, %v1276, 0
      %v1288 = vsel %vm419, %v1277, 0
      %v1291 = vsel %vm432, %v1265, 0
      %1293 = vmatpush.bf16.msra.mxu0 0
      %1294 = vmatpush.bf16.msra.mxu0 0
      %1295 = vmatpush.bf16.msra.mxu0 0
      %1296 = vmatpush.bf16.msra.mxu0 0
      %1297 = vmatpush.bf16.msra.mxu0 0
      %1298 = vmatpush.bf16.msra.mxu0 0
      %1299 = vmatpush.bf16.msra.mxu0 0
      %1300 = vmatpush.bf16.msra.mxu0 %v1291
      %1301 = vmatmul.bf16.gmra.mxu0 %v1279
      %v1302 = vpop.f32.mrf.mxu0
      %v1303 = vadd.f32 0.0, %v1302
      %v1304 = vpop.f32.mrf.mxu0
      %v1305 = vadd.f32 0.0, %v1304
      %1306 = vmatmul.bf16.gmra.mxu0 %v1282
      %v1307 = vpop.f32.mrf.mxu0
      %v1308 = vadd.f32 0.0, %v1307
      %v1309 = vpop.f32.mrf.mxu0
      %v1310 = vadd.f32 0.0, %v1309
      %1311 = vmatmul.bf16.gmra.mxu0 %v1285
      %v1312 = vpop.f32.mrf.mxu0
      %v1313 = vadd.f32 0.0, %v1312
      %v1314 = vpop.f32.mrf.mxu0
      %v1315 = vadd.f32 0.0, %v1314
      %1316 = vmatmul.bf16.gmra.mxu0 %v1288
      %v1317 = vpop.f32.mrf.mxu0
      %v1318 = vadd.f32 0.0, %v1317
      %v1319 = vpop.f32.mrf.mxu0
      %v1320 = vadd.f32 0.0, %v1319
      %1321 = vdwg.mxu0
      %v1322 = vadd.f32 %v1128, %v1303
      %v1323 = vadd.f32 %v1129, %v1305
      %v1324 = vadd.f32 %v1130, %v1308
      %v1325 = vadd.f32 %v1131, %v1310
      %v1326 = vadd.f32 %v1132, %v1313
      %v1327 = vadd.f32 %v1133, %v1315
      %v1328 = vadd.f32 %v1134, %v1318
      %v1329 = vadd.f32 %v1135, %v1320
      %v1330 = vld [vmem:[%s1053] sm:$0xe]
      %v1331 = vld [vmem:[%s1053 + $0x8] sm:$0xe]
      %v1332 = vld [vmem:[%s1053 + $0x10] sm:$0xe]
      %v1333 = vld [vmem:[%s1053 + $0x18] sm:$0xe]
      %v1334 = vld [vmem:[%s1053 + $0x20] sm:$0xe]
      %v1335 = vld [vmem:[%s1053 + $0x28] sm:$0xe]
      %v1336 = vld [vmem:[%s1053 + $0x30] sm:$0xe]
      %v1337 = vld [vmem:[%s1053 + $0x38] sm:$0xe]
      %v1354 = vrot.slane %v1330, 5
      %v1355 = vrot.slane %v1354, 4
      %v1356 = vrot.slane %v1137, 5
      %v1357 = vsel %vm555, %v1355, %v1356
      %v1358 = vrot.slane %v1331, 5
      %v1359 = vrot.slane %v1358, 4
      %v1360 = vrot.slane %v1139, 5
      %v1361 = vsel %vm555, %v1359, %v1360
      %v1362 = vrot.slane %v1332, 5
      %v1363 = vrot.slane %v1362, 4
      %v1364 = vrot.slane %v1141, 5
      %v1365 = vsel %vm555, %v1363, %v1364
      %v1366 = vrot.slane %v1333, 5
      %v1367 = vrot.slane %v1366, 4
      %v1368 = vrot.slane %v1143, 5
      %v1369 = vsel %vm555, %v1367, %v1368
      %v1370 = vrot.slane %v1334, 5
      %v1371 = vrot.slane %v1370, 4
      %v1372 = vrot.slane %v1145, 5
      %v1373 = vsel %vm555, %v1371, %v1372
      %v1374 = vrot.slane %v1335, 5
      %v1375 = vrot.slane %v1374, 4
      %v1376 = vrot.slane %v1147, 5
      %v1377 = vsel %vm555, %v1375, %v1376
      %v1378 = vrot.slane %v1336, 5
      %v1379 = vrot.slane %v1378, 4
      %v1380 = vrot.slane %v1149, 5
      %v1381 = vsel %vm555, %v1379, %v1380
      %v1382 = vrot.slane %v1337, 5
      %v1383 = vrot.slane %v1382, 4
      %v1384 = vrot.slane %v1151, 5
      %v1385 = vsel %vm555, %v1383, %v1384
      %s1386 = scalar_lea.vmem %s1, 32
      %v1387 = vld [vmem:[%s1386] sm:$0xf]
      %v1388 = vunpack.c.l.b16 %v1357
      %v1389 = vunpack.c.l.b16 %v1361
      %v1390 = vunpack.c.l.b16 %v1365
      %v1391 = vunpack.c.l.b16 %v1369
      %v1392 = vunpack.c.l.b16 %v1373
      %v1393 = vunpack.c.l.b16 %v1377
      %v1394 = vunpack.c.l.b16 %v1381
      %v1395 = vunpack.c.l.b16 %v1385
      %v1396 = vpack.c.b16 %v1389, %v1388
      %v1397 = vpack.c.b16 %v1391, %v1390
      %v1398 = vpack.c.b16 %v1393, %v1392
      %v1399 = vpack.c.b16 %v1395, %v1394
      %v1401 = vsel %vm419, %v1396, 0
      %v1404 = vsel %vm419, %v1397, 0
      %v1407 = vsel %vm419, %v1398, 0
      %v1410 = vsel %vm419, %v1399, 0
      %v1413 = vsel %vm432, %v1387, 0
      %1415 = vmatpush.bf16.msra.mxu0 0
      %1416 = vmatpush.bf16.msra.mxu0 0
      %1417 = vmatpush.bf16.msra.mxu0 0
      %1418 = vmatpush.bf16.msra.mxu0 0
      %1419 = vmatpush.bf16.msra.mxu0 0
      %1420 = vmatpush.bf16.msra.mxu0 0
      %1421 = vmatpush.bf16.msra.mxu0 0
      %1422 = vmatpush.bf16.msra.mxu0 %v1413
      %1423 = vmatmul.bf16.gmra.mxu0 %v1401
      %v1424 = vpop.f32.mrf.mxu0
      %v1425 = vadd.f32 0.0, %v1424
      %v1426 = vpop.f32.mrf.mxu0
      %v1427 = vadd.f32 0.0, %v1426
      %1428 = vmatmul.bf16.gmra.mxu0 %v1404
      %v1429 = vpop.f32.mrf.mxu0
      %v1430 = vadd.f32 0.0, %v1429
      %v1431 = vpop.f32.mrf.mxu0
      %v1432 = vadd.f32 0.0, %v1431
      %1433 = vmatmul.bf16.gmra.mxu0 %v1407
      %v1434 = vpop.f32.mrf.mxu0
      %v1435 = vadd.f32 0.0, %v1434
      %v1436 = vpop.f32.mrf.mxu0
      %v1437 = vadd.f32 0.0, %v1436
      %1438 = vmatmul.bf16.gmra.mxu0 %v1410
      %v1439 = vpop.f32.mrf.mxu0
      %v1440 = vadd.f32 0.0, %v1439
      %v1441 = vpop.f32.mrf.mxu0
      %v1442 = vadd.f32 0.0, %v1441
      %1443 = vdwg.mxu0
      %v1444 = vadd.f32 %v1322, %v1425
      %v1445 = vadd.f32 %v1323, %v1427
      %v1446 = vadd.f32 %v1324, %v1430
      %v1447 = vadd.f32 %v1325, %v1432
      %v1448 = vadd.f32 %v1326, %v1435
      %v1449 = vadd.f32 %v1327, %v1437
      %v1450 = vadd.f32 %v1328, %v1440
      %v1451 = vadd.f32 %v1329, %v1442
      %v1452 = vld [vmem:[%s2] sm:$0x1]
      %v1454 = vperm.slane %v1452, 0
      %v1456 = vadd.f32 %v1444, %v1454
      %v1457 = vadd.f32 %v1445, %v1454
      %v1458 = vadd.f32 %v1446, %v1454
      %v1459 = vadd.f32 %v1447, %v1454
      %v1460 = vadd.f32 %v1448, %v1454
      %v1461 = vadd.f32 %v1449, %v1454
      %v1462 = vadd.f32 %v1450, %v1454
      %v1463 = vadd.f32 %v1451, %v1454
      %v1464 = vld [vmem:[%s266] sm:$0xf]
      %v1465 = vld [vmem:[%s266 + $0x4] sm:$0xf]
      %v1466 = vld [vmem:[%s266 + $0x8] sm:$0xf]
      %v1467 = vld [vmem:[%s266 + $0xc] sm:$0xf]
      %v1468 = vld [vmem:[%s266 + $0x10] sm:$0xf]
      %v1469 = vld [vmem:[%s266 + $0x14] sm:$0xf]
      %v1470 = vld [vmem:[%s266 + $0x18] sm:$0xf]
      %v1471 = vld [vmem:[%s266 + $0x1c] sm:$0xf]
      %v1472 = vld [vmem:[%s4] sm:$0x3]
      %v1481 = vunpack.c.l.b16 %v1464
      %v1482 = vunpack.c.l.b16 %v1465
      %v1483 = vunpack.c.l.b16 %v1466
      %v1484 = vunpack.c.l.b16 %v1467
      %v1485 = vunpack.c.l.b16 %v1468
      %v1486 = vunpack.c.l.b16 %v1469
      %v1487 = vunpack.c.l.b16 %v1470
      %v1488 = vunpack.c.l.b16 %v1471
      %v1489 = vpack.c.b16 %v1482, %v1481
      %v1490 = vpack.c.b16 %v1484, %v1483
      %v1491 = vpack.c.b16 %v1486, %v1485
      %v1492 = vpack.c.b16 %v1488, %v1487
      %vm1493 = vcmask 31744
      %v1495 = vsel %vm1493, %v1489, 0
      %v1498 = vsel %vm1493, %v1490, 0
      %v1501 = vsel %vm1493, %v1491, 0
      %v1504 = vsel %vm1493, %v1492, 0
      %vm1506 = vcmask 1041408
      %v1508 = vsel %vm1506, %v1472, 0
      %1510 = vmatpush.bf16.msra.mxu0 0
      %1511 = vmatpush.bf16.msra.mxu0 0
      %1512 = vmatpush.bf16.msra.mxu0 0
      %1513 = vmatpush.bf16.msra.mxu0 0
      %1514 = vmatpush.bf16.msra.mxu0 0
      %1515 = vmatpush.bf16.msra.mxu0 0
      %1516 = vmatpush.bf16.msra.mxu0 0
      %1517 = vmatpush.bf16.msra.mxu0 %v1508
      %1518 = vmatmul.bf16.gmra.mxu0 %v1495
      %v1519 = vpop.f32.mrf.mxu0
      %v1520 = vadd.f32 0.0, %v1519
      %v1521 = vpop.f32.mrf.mxu0
      %v1522 = vadd.f32 0.0, %v1521
      %1523 = vmatmul.bf16.gmra.mxu0 %v1498
      %v1524 = vpop.f32.mrf.mxu0
      %v1525 = vadd.f32 0.0, %v1524
      %v1526 = vpop.f32.mrf.mxu0
      %v1527 = vadd.f32 0.0, %v1526
      %1528 = vmatmul.bf16.gmra.mxu0 %v1501
      %v1529 = vpop.f32.mrf.mxu0
      %v1530 = vadd.f32 0.0, %v1529
      %v1531 = vpop.f32.mrf.mxu0
      %v1532 = vadd.f32 0.0, %v1531
      %1533 = vmatmul.bf16.gmra.mxu0 %v1504
      %v1534 = vpop.f32.mrf.mxu0
      %v1535 = vadd.f32 0.0, %v1534
      %v1536 = vpop.f32.mrf.mxu0
      %v1537 = vadd.f32 0.0, %v1536
      %1538 = vdwg.mxu0
      %v1539 = vadd.f32 %v1456, %v1520
      %v1540 = vadd.f32 %v1457, %v1522
      %v1541 = vadd.f32 %v1458, %v1525
      %v1542 = vadd.f32 %v1459, %v1527
      %v1543 = vadd.f32 %v1460, %v1530
      %v1544 = vadd.f32 %v1461, %v1532
      %v1545 = vadd.f32 %v1462, %v1535
      %v1546 = vadd.f32 %v1463, %v1537
      %v1547 = vld [vmem:[%s5] sm:$0x1]
      %v1549 = vperm.slane %v1547, 0
      %v1551 = vadd.f32 %v1539, %v1549
      %v1552 = vadd.f32 %v1540, %v1549
      %v1553 = vadd.f32 %v1541, %v1549
      %v1554 = vadd.f32 %v1542, %v1549
      %v1555 = vadd.f32 %v1543, %v1549
      %v1556 = vadd.f32 %v1544, %v1549
      %v1557 = vadd.f32 %v1545, %v1549
      %v1558 = vadd.f32 %v1546, %v1549
      %v1559 = vmax.f32 %v1551, 0.0
      %v1560 = vmax.f32 %v1552, 0.0
      %v1561 = vmax.f32 %v1553, 0.0
      %v1562 = vmax.f32 %v1554, 0.0
      %v1563 = vmax.f32 %v1555, 0.0
      %v1564 = vmax.f32 %v1556, 0.0
      %v1565 = vmax.f32 %v1557, 0.0
      %v1566 = vmax.f32 %v1558, 0.0
      %1567 = vst.msk [vmem:[%s271] sm:$0xff] %vm419, %v1559
      %1568 = vst.msk [vmem:[%s271 + $0x8] sm:$0xff] %vm419, %v1560
      %1569 = vst.msk [vmem:[%s271 + $0x10] sm:$0xff] %vm419, %v1561
      %1570 = vst.msk [vmem:[%s271 + $0x18] sm:$0xff] %vm419, %v1562
      %1571 = vst.msk [vmem:[%s271 + $0x20] sm:$0xff] %vm419, %v1563
      %1572 = vst.msk [vmem:[%s271 + $0x28] sm:$0xff] %vm419, %v1564
      %1573 = vst.msk [vmem:[%s271 + $0x30] sm:$0xff] %vm419, %v1565
      %1574 = vst.msk [vmem:[%s271 + $0x38] sm:$0xff] %vm419, %v1566
      %p1575 = scmp.lt.s32.totalorder %s17, 1
      %s1576 = scalar_select %p1575, %s17, 1
      %s1577 = smul.addr %s1576, 8
      %s1578 = smul.addr %s1577, 8
      %s1579 = scalar_lea.vmem %s6, %s1578
      // Predicated region
      $region45: #{basic_block_forward.3} parent=43 // pred_check
        %p1580 = pneg %p171
      $region46: #{basic_block_forward.3} parent=43 // pred_check_branch
        %1582 = sbr.rel (%p1580) target = $region48
      $region47: #{basic_block_forward.3} parent=43 // pred_region
        _
      $region48: #{basic_block_forward.3} parent=43 // pred_fallthru
        _
    $region44: #{basic_block_forward.3} parent=5 // pred_fallthru
      _
    %p1583 = scmp.le.s32.totalorder 2, %s12
    // Predicated region
    $region49: #{basic_block_forward.3} parent=5 // pred_check
      %p1584 = pneg %p1583
    $region50: #{basic_block_forward.3} parent=5 // pred_check_branch
      %1586 = sbr.rel (%p1584) target = $region52
    $region51: #{basic_block_forward.3} parent=5 // pred_region
      %s1587 = ssub.s32 %s12, 2
      // Predicated region
      $region53: #{basic_block_forward.3} parent=51 // pred_check
        %p1588 = pneg %p177
      $region54: #{basic_block_forward.3} parent=51 // pred_check_branch
        %1590 = sbr.rel (%p1588) target = $region56
      $region55: #{basic_block_forward.3} parent=51 // pred_region
        %p1591 = scmp.lt.s32.totalorder %s18, 1
        %s1592 = scalar_select %p1591, %s18, 1
        %s1593 = smul.addr %s1592, 8
        %s1594 = smul.addr %s1593, 8
        %s1595 = scalar_lea.vmem %s6, %s1594
      $region56: #{basic_block_forward.3} parent=51 // pred_fallthru
        _
    $region52: #{basic_block_forward.3} parent=5 // pred_fallthru
      _
  $region6: #{basic_block_forward.3} parent=0 // loop_footer
    %s16 = sadd.s32 1, %s12
  $region7: #{basic_block_forward.3} parent=0 // loop_footer_branch
    %11 = sbr.rel target = $region3
  $region8: #{basic_block_forward.3} parent=0 // loop_exit
    _

</llo_original>
